<compile_context>
chip_gen: v6e
topology: v6e:2x2x1
jax: 0.10.0
libtpu: 0.0.40
codegen_flags: <defaults>
</compile_context>

<pallas_src>
import functools

import jax
import jax.numpy as jnp
import numpy as np
from jax import lax
from jax.experimental import pallas as pl
from jax.experimental.pallas import tpu as pltpu


# ----------------------------- Pallas kernel --------------------------------
def _lstm_chunk_kernel(x_ref, h0_ref, c0_ref, wih_ref, whh_ref, bg_ref,
                       wlin_ref, blin_ref,
                       y_ref, hn_ref, cn_ref,
                       h_scr, c_scr, gx_scr, hs_scr,
                       *, t_valid, t_padded):
    """One grid step == one (batch-shard, time-chunk) tile of the LSTM + fused Linear."""
    T_c, B_p, H = x_ref.shape            # chunk length, batch shard, hidden
    L_p = y_ref.shape[-1]                # padded label dim (lane-dense)
    chunk = pl.program_id(1)             # grid = (batch_shards, time_chunks)
    last_chunk = pl.num_programs(1) - 1

    # Load the provided initial states into the carried scratch on the first chunk
    # of every batch shard.
    @pl.when(chunk == 0)
    def _():
        h_scr[...] = h0_ref[...]
        c_scr[...] = c0_ref[...]

    # (1) Hoisted input projection: one big bf16 MXU matmul (f32 accumulation) for
    #     the whole chunk. PyTorch LSTM gate layout along 4H: [i, f, g, o].
    x2d = x_ref[...].reshape(T_c * B_p, H)                       # bf16
    gx = (jnp.dot(x2d, wih_ref[...], preferred_element_type=jnp.float32)
          + bg_ref[...])                                         # [T_c*B_p, 4H] f32
    gx_scr[...] = gx.reshape(T_c, B_p, 4 * H)

    # (2) Sequential recurrence: only h_prev @ W_hh^T (bf16 operands) is on the
    #     critical path. Gate math stays f32 (no bf16 VPU/EUP on v5e).
    whh = whh_ref[...]                                           # bf16, hoisted

    def step(t, carry):
        h_prev, c_prev = carry
        gates = gx_scr[t] + jnp.dot(h_prev.astype(jnp.bfloat16), whh,
                                    preferred_element_type=jnp.float32)  # [B_p, 4H]
        # Single-EUP logistic: sigmoid(x) = 0.5*tanh(0.5*x) + 0.5
        i_g = 0.5 * jnp.tanh(0.5 * gates[:, 0 * H:1 * H]) + 0.5
        f_g = 0.5 * jnp.tanh(0.5 * gates[:, 1 * H:2 * H]) + 0.5
        g_g = jnp.tanh(gates[:, 2 * H:3 * H])
        o_g = 0.5 * jnp.tanh(0.5 * gates[:, 3 * H:4 * H]) + 0.5
        c_new = f_g * c_prev + i_g * g_g
        h_new = o_g * jnp.tanh(c_new)
        if t_padded != t_valid:
            # Only emitted when the sequence was zero-padded along time: freeze the
            # state on padded timesteps so h_n / c_n stay correct.
            valid = (chunk * T_c + t) < t_valid
            h_new = jnp.where(valid, h_new, h_prev)
            c_new = jnp.where(valid, c_new, c_prev)
        hs_scr[t] = h_new.astype(hs_scr.dtype)                   # stage h_t (bf16)
        return h_new, c_new

    h_fin, c_fin = lax.fori_loop(0, T_c, step, (h_scr[...], c_scr[...]),
                                 unroll=min(8, T_c))

    # Keep the carry only if more chunks follow (skip redundant stores on the last).
    @pl.when(chunk != last_chunk)
    def _():
        h_scr[...] = h_fin
        c_scr[...] = c_fin

    # (3) Deferred, lane-dense output projection for the whole chunk (bf16 operands,
    #     f32 accumulation + f32 bias).
    hs2d = hs_scr[...].reshape(T_c * B_p, H)                     # bf16
    y = (jnp.dot(hs2d, wlin_ref[...], preferred_element_type=jnp.float32)
         + blin_ref[...])                                        # [T_c*B_p, L_p]
    y_ref[...] = y.reshape(T_c, B_p, L_p).astype(y_ref.dtype)

    # Final states written once, on the last chunk only (still live in vregs).
    @pl.when(chunk == last_chunk)
    def _():
        hn_ref[...] = h_fin
        cn_ref[...] = c_fin


def lstm_linear_pallas(x_tbh, h0, c0, w_ih_t, w_hh_t, b_gates, w_lin_t, b_lin,
                       *, t_chunk, b_shard, t_valid):
    """x_tbh: [T_pad, B_pad, H] bf16. Returns (logits [T_pad, B_pad, L_pad] f32,
    h_n, c_n [B_pad, H] f32)."""
    T_pad, B_p, H = x_tbh.shape
    L_p = w_lin_t.shape[-1]
    assert T_pad % t_chunk == 0 and B_p % b_shard == 0
    num_chunks = T_pad // t_chunk
    num_bshards = B_p // b_shard

    kernel = functools.partial(_lstm_chunk_kernel, t_valid=t_valid, t_padded=T_pad)

    grid_spec = pltpu.PrefetchScalarGridSpec(
        num_scalar_prefetch=0,
        grid=(num_bshards, num_chunks),
        in_specs=[
            pl.BlockSpec((t_chunk, b_shard, H), lambda b, c: (c, b, 0)),   # x chunk (bf16)
            pl.BlockSpec((b_shard, H), lambda b, c: (b, 0)),               # h0
            pl.BlockSpec((b_shard, H), lambda b, c: (b, 0)),               # c0
            pl.BlockSpec((H, 4 * H), lambda b, c: (0, 0)),                 # W_ih^T (bf16)
            pl.BlockSpec((H, 4 * H), lambda b, c: (0, 0)),                 # W_hh^T (bf16)
            pl.BlockSpec((1, 4 * H), lambda b, c: (0, 0)),                 # b_ih + b_hh (f32)
            pl.BlockSpec((H, L_p), lambda b, c: (0, 0)),                   # W_lin^T (bf16, L padded)
            pl.BlockSpec((1, L_p), lambda b, c: (0, 0)),                   # b_lin (f32, L padded)
        ],
        out_specs=[
            pl.BlockSpec((t_chunk, b_shard, L_p), lambda b, c: (c, b, 0)),  # logits chunk
            pl.BlockSpec((b_shard, H), lambda b, c: (b, 0)),                # h_n (resident)
            pl.BlockSpec((b_shard, H), lambda b, c: (b, 0)),                # c_n (resident)
        ],
        scratch_shapes=[
            pltpu.VMEM((b_shard, H), jnp.float32),                  # h carry across chunks
            pltpu.VMEM((b_shard, H), jnp.float32),                  # c carry across chunks
            pltpu.VMEM((t_chunk, b_shard, 4 * H), jnp.float32),     # precomputed input gates
            pltpu.VMEM((t_chunk, b_shard, H), jnp.bfloat16),        # staged h_t (bf16)
        ],
    )

    # Explicit VMEM budget: scratch + double-buffered streamed tiles + weights,
    # clamped under v7x's 64 MiB per-TensorCore VMEM.
    scratch_bytes = (2 * b_shard * H * 4
                     + t_chunk * b_shard * 4 * H * 4
                     + t_chunk * b_shard * H * 2)
    stream_bytes = 2 * (t_chunk * b_shard * H * 2          # x bf16, double-buffered
                        + t_chunk * b_shard * L_p * 4)     # y f32, double-buffered
    weight_bytes = 2 * (2 * H * 4 * H * 2 + H * L_p * 2
                        + 4 * H * 4 + L_p * 4 + 2 * b_shard * H * 4)
    vmem_need = scratch_bytes + stream_bytes + weight_bytes
    vmem_limit = int(min(max(2 * vmem_need, 32 * 1024 * 1024), 60 * 1024 * 1024))

    return pl.pallas_call(
        kernel,
        grid_spec=grid_spec,
        out_shape=(
            jax.ShapeDtypeStruct((T_pad, B_p, L_p), jnp.float32),
            jax.ShapeDtypeStruct((B_p, H), jnp.float32),
            jax.ShapeDtypeStruct((B_p, H), jnp.float32),
        ),
        compiler_params=pltpu.CompilerParams(
            # batch shards are independent (megacore on v7x); time chunks are the
            # sequential recurrence.
            dimension_semantics=("parallel", "arbitrary"),
            vmem_limit_bytes=vmem_limit,
        ),
    )(x_tbh, h0, c0, w_ih_t, w_hh_t, b_gates, w_lin_t, b_lin)


# ----------------------------- Model wrapper ---------------------------------
def init_params(key, num_vocab, num_labels, num_hidden):
    """Deterministic parameter init mirroring SequenceNet's shapes."""
    H = num_hidden
    ks = jax.random.split(key, 7)
    scale = 1.0 / np.sqrt(H)
    embed = jax.random.normal(ks[0], (num_vocab, H), jnp.float32)          # nn.Embedding
    w_ih = jax.random.uniform(ks[1], (4 * H, H), jnp.float32, -scale, scale)
    w_hh = jax.random.uniform(ks[2], (4 * H, H), jnp.float32, -scale, scale)
    b_ih = jax.random.uniform(ks[3], (4 * H,), jnp.float32, -scale, scale)
    b_hh = jax.random.uniform(ks[4], (4 * H,), jnp.float32, -scale, scale)
    w_lin = jax.random.uniform(ks[5], (num_labels, H), jnp.float32, -scale, scale)
    b_lin = jax.random.uniform(ks[6], (num_labels,), jnp.float32, -scale, scale)
    return dict(embed=embed, w_ih=w_ih, w_hh=w_hh, b_ih=b_ih, b_hh=b_hh,
                w_lin=w_lin, b_lin=b_lin)


# Max timesteps per grid step. 512 keeps gx/hs scratch + double-buffered x/y well
# under v7x's 64 MiB VMEM; could be raised to ~1024 on v6e's 128 MiB.
_MAX_TIME_CHUNK = 512


def _plan_time_chunks(T, max_chunk=_MAX_TIME_CHUNK):
    """Pick (t_chunk, T_pad): t_chunk <= max_chunk, T_pad = num_chunks * t_chunk >= T.

    Avoids the degenerate t_chunk=1 fallback for awkward/prime T by padding T up
    (padding per sequence is < num_chunks timesteps)."""
    num_chunks = -(-T // max_chunk)
    t_chunk = -(-T // num_chunks)
    return t_chunk, num_chunks * t_chunk


@jax.jit
def sequence_net_forward(params, tokens, states=None):
    """tokens: int32 [B, T] (batch_first). Returns (logits [B, T, L] f32,
    (h_n, c_n) each [1, B, H] f32)."""
    B, T = tokens.shape
    H = params["embed"].shape[1]
    L = params["w_lin"].shape[0]

    B_pad = ((B + 7) // 8) * 8          # sublane alignment
    L_pad = ((L + 127) // 128) * 128    # lane-dense output store
    t_chunk, T_pad = _plan_time_chunks(T)

    # Megacore batch sharding (v7x): split B_pad in two >=8-row shards when possible.
    if B_pad >= 16 and B_pad % 16 == 0:
        b_shard = B_pad // 2
    else:
        b_shard = B_pad

    # Embedding lookup, gathered time-major in plain JAX; cast to bf16 at the
    # pallas_call boundary (halves the streamed-x DMA, directly the MXU operand).
    x_tbh = jnp.take(params["embed"], tokens.T, axis=0).astype(jnp.bfloat16)  # [T, B, H]
    if B_pad > B:
        x_tbh = jnp.pad(x_tbh, ((0, 0), (0, B_pad - B), (0, 0)))
    if T_pad > T:
        x_tbh = jnp.pad(x_tbh, ((0, T_pad - T), (0, 0), (0, 0)))

    if states is None:
        h0 = jnp.zeros((B_pad, H), jnp.float32)
        c0 = jnp.zeros((B_pad, H), jnp.float32)
    else:
        h0 = jnp.pad(states[0][0], ((0, B_pad - B), (0, 0)))
        c0 = jnp.pad(states[1][0], ((0, B_pad - B), (0, 0)))

    # Pre-transpose / pad weights; cast matmul operands to bf16 (f32 biases).
    w_ih_t = params["w_ih"].T.astype(jnp.bfloat16)                     # [H, 4H]
    w_hh_t = params["w_hh"].T.astype(jnp.bfloat16)                     # [H, 4H]
    b_gates = (params["b_ih"] + params["b_hh"])[None, :]               # [1, 4H] f32
    w_lin_t = jnp.pad(params["w_lin"].T,
                      ((0, 0), (0, L_pad - L))).astype(jnp.bfloat16)   # [H, L_pad]
    b_lin = jnp.pad(params["b_lin"], (0, L_pad - L))[None, :]          # [1, L_pad] f32

    y_tbl, h_n, c_n = lstm_linear_pallas(x_tbh, h0, c0, w_ih_t, w_hh_t,
                                         b_gates, w_lin_t, b_lin,
                                         t_chunk=t_chunk, b_shard=b_shard,
                                         t_valid=T)

    logits = jnp.transpose(y_tbl[:T, :B, :L], (1, 0, 2))               # [B, T, L]
    return logits, (h_n[:B][None], c_n[:B][None])                      # [num_layers=1, B, H]


# ----------------------------- Pure-JAX reference ----------------------------
def reference_forward(params, tokens):
    B, T = tokens.shape
    H = params["embed"].shape[1]
    x_emb = jnp.take(params["embed"], tokens, axis=0)          # [B, T, H]
    b = params["b_ih"] + params["b_hh"]

    def step(carry, x_t):
        h, c = carry
        gates = x_t @ params["w_ih"].T + h @ params["w_hh"].T + b
        i, f, g, o = jnp.split(gates, 4, axis=-1)
        i, f, o = jax.nn.sigmoid(i), jax.nn.sigmoid(f), jax.nn.sigmoid(o)
        g = jnp.tanh(g)
        c_new = f * c + i * g
        h_new = o * jnp.tanh(c_new)
        return (h_new, c_new), h_new

    h0 = jnp.zeros((B, H), jnp.float32)
    c0 = jnp.zeros((B, H), jnp.float32)
    (h_n, c_n), hs = lax.scan(step, (h0, c0), jnp.transpose(x_emb, (1, 0, 2)))
    outs = jnp.transpose(hs, (1, 0, 2)) @ params["w_lin"].T + params["b_lin"]
    return outs, (h_n[None], c_n[None])


# ----------------------------------- main ------------------------------------
if __name__ == "__main__":
    # Shapes consistent with SequenceNet defaults: hidden=128 (HyperParams default),
    # small vocab=16, labels=4, batch=2, seq=8.
    NUM_VOCAB, NUM_LABELS, HIDDEN, B, T = 16, 4, 128, 2, 8

    key = jax.random.PRNGKey(0)
    k_params, k_tokens = jax.random.split(key)
    params = init_params(k_params, NUM_VOCAB, NUM_LABELS, HIDDEN)
    tokens = jax.random.randint(k_tokens, (B, T), 0, NUM_VOCAB, dtype=jnp.int32)

    logits, (h_n, c_n) = sequence_net_forward(params, tokens)
    jax.block_until_ready((logits, h_n, c_n))

    # bf16 MXU operands -> relaxed tolerance vs. the f32 reference.
    ref_logits, (ref_h, ref_c) = reference_forward(params, tokens)
    np.testing.assert_allclose(np.asarray(logits), np.asarray(ref_logits), rtol=2e-2, atol=2e-2)
    np.testing.assert_allclose(np.asarray(h_n), np.asarray(ref_h), rtol=2e-2, atol=2e-2)
    np.testing.assert_allclose(np.asarray(c_n), np.asarray(ref_c), rtol=2e-2, atol=2e-2)

    assert logits.shape == (B, T, NUM_LABELS)
    assert h_n.shape == (1, B, HIDDEN) and c_n.shape == (1, B, HIDDEN)

    print("KERNEL_OK")
</pallas_src>

<mosaic_0001>
module attributes {stable_mosaic.version = 11 : i64} {
  func.func @_lstm_chunk_kernel(%arg0: i32, %arg1: i32, %arg2: memref<8x8x128xbf16, #tpu.memory_space<vmem>>, %arg3: memref<8x128xf32, #tpu.memory_space<vmem>>, %arg4: memref<8x128xf32, #tpu.memory_space<vmem>>, %arg5: memref<128x512xbf16, #tpu.memory_space<vmem>>, %arg6: memref<128x512xbf16, #tpu.memory_space<vmem>>, %arg7: memref<1x512xf32, #tpu.memory_space<vmem>>, %arg8: memref<128x128xbf16, #tpu.memory_space<vmem>>, %arg9: memref<1x128xf32, #tpu.memory_space<vmem>>, %arg10: memref<8x8x128xf32, #tpu.memory_space<vmem>>, %arg11: memref<8x128xf32, #tpu.memory_space<vmem>>, %arg12: memref<8x128xf32, #tpu.memory_space<vmem>>, %arg13: memref<8x128xf32, #tpu.memory_space<vmem>>, %arg14: memref<8x128xf32, #tpu.memory_space<vmem>>, %arg15: memref<8x8x512xf32, #tpu.memory_space<vmem>>, %arg16: memref<8x8x128xbf16, #tpu.memory_space<vmem>>) attributes {dimension_semantics = [#tpu.dimension_semantics<parallel>, #tpu.dimension_semantics<arbitrary>], iteration_bounds = array<i64: 1, 1>, scalar_prefetch = 0 : i64, scratch_operands = 4 : i64, tpu.core_type = #tpu.core_type<tc>, window_params = [{transform_indices = @transform_0, window_bounds = array<i64: 8, 8, 128>}, {transform_indices = @transform_1, window_bounds = array<i64: 8, 128>}, {transform_indices = @transform_2, window_bounds = array<i64: 8, 128>}, {pipeline_mode = #tpu.pipeline_mode<synchronous>, transform_indices = @transform_3, window_bounds = array<i64: 128, 512>}, {pipeline_mode = #tpu.pipeline_mode<synchronous>, transform_indices = @transform_4, window_bounds = array<i64: 128, 512>}, {pipeline_mode = #tpu.pipeline_mode<synchronous>, transform_indices = @transform_5, window_bounds = array<i64: 1, 512>}, {pipeline_mode = #tpu.pipeline_mode<synchronous>, transform_indices = @transform_6, window_bounds = array<i64: 128, 128>}, {pipeline_mode = #tpu.pipeline_mode<synchronous>, transform_indices = @transform_7, window_bounds = array<i64: 1, 128>}, {transform_indices = @transform_8, window_bounds = array<i64: 8, 8, 128>}, {transform_indices = @transform_9, window_bounds = array<i64: 8, 128>}, {transform_indices = @transform_10, window_bounds = array<i64: 8, 128>}]} {
    %c0_i32 = arith.constant 0 : i32
    %0 = arith.cmpi eq, %arg1, %c0_i32 : i32
    %1 = arith.extui %0 : i1 to i32
    %c0_i32_0 = arith.constant 0 : i32
    %2 = arith.cmpi ne, %1, %c0_i32_0 : i32
    scf.if %2 {
      %c0_144 = arith.constant 0 : index
      %c0_145 = arith.constant 0 : index
      %366 = vector.load %arg3[%c0_144, %c0_145] : memref<8x128xf32, #tpu.memory_space<vmem>>, vector<8x128xf32>
      %c0_146 = arith.constant 0 : index
      %c0_147 = arith.constant 0 : index
      %367 = vector.load %arg13[%c0_146, %c0_147] : memref<8x128xf32, #tpu.memory_space<vmem>>, vector<8x128xf32>
      tpu.vector_store %arg13[%c0_146, %c0_147], %366 {strides = array<i32>} : memref<8x128xf32, #tpu.memory_space<vmem>>, vector<8x128xf32>,
      %c0_148 = arith.constant 0 : index
      %c0_149 = arith.constant 0 : index
      %368 = vector.load %arg4[%c0_148, %c0_149] : memref<8x128xf32, #tpu.memory_space<vmem>>, vector<8x128xf32>
      %c0_150 = arith.constant 0 : index
      %c0_151 = arith.constant 0 : index
      %369 = vector.load %arg14[%c0_150, %c0_151] : memref<8x128xf32, #tpu.memory_space<vmem>>, vector<8x128xf32>
      tpu.vector_store %arg14[%c0_150, %c0_151], %368 {strides = array<i32>} : memref<8x128xf32, #tpu.memory_space<vmem>>, vector<8x128xf32>,
    } else {
    }
    %c0 = arith.constant 0 : index
    %c0_1 = arith.constant 0 : index
    %c0_2 = arith.constant 0 : index
    %3 = vector.load %arg2[%c0, %c0_1, %c0_2] : memref<8x8x128xbf16, #tpu.memory_space<vmem>>, vector<8x8x128xbf16>
    %4 = vector.shape_cast %3 : vector<8x8x128xbf16> to vector<64x128xbf16>
    %c0_3 = arith.constant 0 : index
    %c0_4 = arith.constant 0 : index
    %5 = vector.load %arg5[%c0_3, %c0_4] : memref<128x512xbf16, #tpu.memory_space<vmem>>, vector<128x512xbf16>
    %cst = arith.constant dense<0.000000e+00> : vector<64x512xf32>
    %6 = tpu.matmul %4, %5, %cst {dimension_numbers = #tpu.dot_dimension_numbers<[1], [0], [0], [1], [0, 0, 1, 1], [], []>} : vector<64x128xbf16>, vector<128x512xbf16>, vector<64x512xf32> -> vector<64x512xf32>
    %c0_5 = arith.constant 0 : index
    %c0_6 = arith.constant 0 : index
    %7 = vector.load %arg7[%c0_5, %c0_6] : memref<1x512xf32, #tpu.memory_space<vmem>>, vector<1x512xf32>
    %8 = vector.broadcast %7 : vector<1x512xf32> to vector<64x512xf32>
    %9 = arith.addf %6, %8 : vector<64x512xf32>
    %10 = vector.shape_cast %9 : vector<64x512xf32> to vector<8x8x512xf32>
    %c0_7 = arith.constant 0 : index
    %c0_8 = arith.constant 0 : index
    %c0_9 = arith.constant 0 : index
    %11 = vector.load %arg15[%c0_7, %c0_8, %c0_9] : memref<8x8x512xf32, #tpu.memory_space<vmem>>, vector<8x8x512xf32>
    tpu.vector_store %arg15[%c0_7, %c0_8, %c0_9], %10 {strides = array<i32>} : memref<8x8x512xf32, #tpu.memory_space<vmem>>, vector<8x8x512xf32>,
    %c0_10 = arith.constant 0 : index
    %c0_11 = arith.constant 0 : index
    %12 = vector.load %arg6[%c0_10, %c0_11] : memref<128x512xbf16, #tpu.memory_space<vmem>>, vector<128x512xbf16>
    %c0_12 = arith.constant 0 : index
    %c0_13 = arith.constant 0 : index
    %13 = vector.load %arg13[%c0_12, %c0_13] : memref<8x128xf32, #tpu.memory_space<vmem>>, vector<8x128xf32>
    %c0_14 = arith.constant 0 : index
    %c0_15 = arith.constant 0 : index
    %14 = vector.load %arg14[%c0_14, %c0_15] : memref<8x128xf32, #tpu.memory_space<vmem>>, vector<8x128xf32>
    %c0_i32_16 = arith.constant 0 : i32
    %15 = arith.index_cast %c0_i32_16 : i32 to index
    %c0_17 = arith.constant 0 : index
    %c0_18 = arith.constant 0 : index
    %16 = vector.load %arg15[%15, %c0_17, %c0_18] : memref<8x8x512xf32, #tpu.memory_space<vmem>>, vector<1x8x512xf32>
    %17 = vector.shape_cast %16 : vector<1x8x512xf32> to vector<8x512xf32>
    %18 = arith.truncf %13 : vector<8x128xf32> to vector<8x128xbf16>
    %cst_19 = arith.constant dense<0.000000e+00> : vector<8x512xf32>
    %19 = tpu.matmul %18, %12, %cst_19 {dimension_numbers = #tpu.dot_dimension_numbers<[1], [0], [0], [1], [0, 0, 1, 1], [], []>} : vector<8x128xbf16>, vector<128x512xbf16>, vector<8x512xf32> -> vector<8x512xf32>
    %20 = arith.addf %17, %19 : vector<8x512xf32>
    %21 = vector.extract_strided_slice %20 {offsets = [0, 0], sizes = [8, 128], strides = [1, 1]} : vector<8x512xf32> to vector<8x128xf32>
    %cst_20 = arith.constant 5.000000e-01 : f32
    %22 = vector.broadcast %cst_20 : f32 to vector<8x128xf32>
    %23 = arith.mulf %22, %21 : vector<8x128xf32>
    %24 = math.tanh %23 : vector<8x128xf32>
    %cst_21 = arith.constant 5.000000e-01 : f32
    %25 = vector.broadcast %cst_21 : f32 to vector<8x128xf32>
    %26 = arith.mulf %25, %24 : vector<8x128xf32>
    %cst_22 = arith.constant 5.000000e-01 : f32
    %27 = vector.broadcast %cst_22 : f32 to vector<8x128xf32>
    %28 = arith.addf %26, %27 : vector<8x128xf32>
    %29 = vector.extract_strided_slice %20 {offsets = [0, 128], sizes = [8, 128], strides = [1, 1]} : vector<8x512xf32> to vector<8x128xf32>
    %cst_23 = arith.constant 5.000000e-01 : f32
    %30 = vector.broadcast %cst_23 : f32 to vector<8x128xf32>
    %31 = arith.mulf %30, %29 : vector<8x128xf32>
    %32 = math.tanh %31 : vector<8x128xf32>
    %cst_24 = arith.constant 5.000000e-01 : f32
    %33 = vector.broadcast %cst_24 : f32 to vector<8x128xf32>
    %34 = arith.mulf %33, %32 : vector<8x128xf32>
    %cst_25 = arith.constant 5.000000e-01 : f32
    %35 = vector.broadcast %cst_25 : f32 to vector<8x128xf32>
    %36 = arith.addf %34, %35 : vector<8x128xf32>
    %37 = vector.extract_strided_slice %20 {offsets = [0, 256], sizes = [8, 128], strides = [1, 1]} : vector<8x512xf32> to vector<8x128xf32>
    %38 = math.tanh %37 : vector<8x128xf32>
    %39 = vector.extract_strided_slice %20 {offsets = [0, 384], sizes = [8, 128], strides = [1, 1]} : vector<8x512xf32> to vector<8x128xf32>
    %cst_26 = arith.constant 5.000000e-01 : f32
    %40 = vector.broadcast %cst_26 : f32 to vector<8x128xf32>
    %41 = arith.mulf %40, %39 : vector<8x128xf32>
    %42 = math.tanh %41 : vector<8x128xf32>
    %cst_27 = arith.constant 5.000000e-01 : f32
    %43 = vector.broadcast %cst_27 : f32 to vector<8x128xf32>
    %44 = arith.mulf %43, %42 : vector<8x128xf32>
    %cst_28 = arith.constant 5.000000e-01 : f32
    %45 = vector.broadcast %cst_28 : f32 to vector<8x128xf32>
    %46 = arith.addf %44, %45 : vector<8x128xf32>
    %47 = arith.mulf %36, %14 : vector<8x128xf32>
    %48 = arith.mulf %28, %38 : vector<8x128xf32>
    %49 = arith.addf %47, %48 : vector<8x128xf32>
    %50 = math.tanh %49 : vector<8x128xf32>
    %51 = arith.mulf %46, %50 : vector<8x128xf32>
    %52 = arith.truncf %51 : vector<8x128xf32> to vector<8x128xbf16>
    %53 = arith.index_cast %c0_i32_16 : i32 to index
    %c0_29 = arith.constant 0 : index
    %c0_30 = arith.constant 0 : index
    %54 = vector.load %arg16[%53, %c0_29, %c0_30] : memref<8x8x128xbf16, #tpu.memory_space<vmem>>, vector<1x8x128xbf16>
    %55 = vector.shape_cast %54 : vector<1x8x128xbf16> to vector<8x128xbf16>
    %56 = vector.shape_cast %52 : vector<8x128xbf16> to vector<1x8x128xbf16>
    tpu.vector_store %arg16[%53, %c0_29, %c0_30], %56 {strides = array<i32>} : memref<8x8x128xbf16, #tpu.memory_space<vmem>>, vector<1x8x128xbf16>,
    %c1_i32 = arith.constant 1 : i32
    %57 = arith.index_cast %c1_i32 : i32 to index
    %c0_31 = arith.constant 0 : index
    %c0_32 = arith.constant 0 : index
    %58 = vector.load %arg15[%57, %c0_31, %c0_32] : memref<8x8x512xf32, #tpu.memory_space<vmem>>, vector<1x8x512xf32>
    %59 = vector.shape_cast %58 : vector<1x8x512xf32> to vector<8x512xf32>
    %60 = arith.truncf %51 : vector<8x128xf32> to vector<8x128xbf16>
    %cst_33 = arith.constant dense<0.000000e+00> : vector<8x512xf32>
    %61 = tpu.matmul %60, %12, %cst_33 {dimension_numbers = #tpu.dot_dimension_numbers<[1], [0], [0], [1], [0, 0, 1, 1], [], []>} : vector<8x128xbf16>, vector<128x512xbf16>, vector<8x512xf32> -> vector<8x512xf32>
    %62 = arith.addf %59, %61 : vector<8x512xf32>
    %63 = vector.extract_strided_slice %62 {offsets = [0, 0], sizes = [8, 128], strides = [1, 1]} : vector<8x512xf32> to vector<8x128xf32>
    %cst_34 = arith.constant 5.000000e-01 : f32
    %64 = vector.broadcast %cst_34 : f32 to vector<8x128xf32>
    %65 = arith.mulf %64, %63 : vector<8x128xf32>
    %66 = math.tanh %65 : vector<8x128xf32>
    %cst_35 = arith.constant 5.000000e-01 : f32
    %67 = vector.broadcast %cst_35 : f32 to vector<8x128xf32>
    %68 = arith.mulf %67, %66 : vector<8x128xf32>
    %cst_36 = arith.constant 5.000000e-01 : f32
    %69 = vector.broadcast %cst_36 : f32 to vector<8x128xf32>
    %70 = arith.addf %68, %69 : vector<8x128xf32>
    %71 = vector.extract_strided_slice %62 {offsets = [0, 128], sizes = [8, 128], strides = [1, 1]} : vector<8x512xf32> to vector<8x128xf32>
    %cst_37 = arith.constant 5.000000e-01 : f32
    %72 = vector.broadcast %cst_37 : f32 to vector<8x128xf32>
    %73 = arith.mulf %72, %71 : vector<8x128xf32>
    %74 = math.tanh %73 : vector<8x128xf32>
    %cst_38 = arith.constant 5.000000e-01 : f32
    %75 = vector.broadcast %cst_38 : f32 to vector<8x128xf32>
    %76 = arith.mulf %75, %74 : vector<8x128xf32>
    %cst_39 = arith.constant 5.000000e-01 : f32
    %77 = vector.broadcast %cst_39 : f32 to vector<8x128xf32>
    %78 = arith.addf %76, %77 : vector<8x128xf32>
    %79 = vector.extract_strided_slice %62 {offsets = [0, 256], sizes = [8, 128], strides = [1, 1]} : vector<8x512xf32> to vector<8x128xf32>
    %80 = math.tanh %79 : vector<8x128xf32>
    %81 = vector.extract_strided_slice %62 {offsets = [0, 384], sizes = [8, 128], strides = [1, 1]} : vector<8x512xf32> to vector<8x128xf32>
    %cst_40 = arith.constant 5.000000e-01 : f32
    %82 = vector.broadcast %cst_40 : f32 to vector<8x128xf32>
    %83 = arith.mulf %82, %81 : vector<8x128xf32>
    %84 = math.tanh %83 : vector<8x128xf32>
    %cst_41 = arith.constant 5.000000e-01 : f32
    %85 = vector.broadcast %cst_41 : f32 to vector<8x128xf32>
    %86 = arith.mulf %85, %84 : vector<8x128xf32>
    %cst_42 = arith.constant 5.000000e-01 : f32
    %87 = vector.broadcast %cst_42 : f32 to vector<8x128xf32>
    %88 = arith.addf %86, %87 : vector<8x128xf32>
    %89 = arith.mulf %78, %49 : vector<8x128xf32>
    %90 = arith.mulf %70, %80 : vector<8x128xf32>
    %91 = arith.addf %89, %90 : vector<8x128xf32>
    %92 = math.tanh %91 : vector<8x128xf32>
    %93 = arith.mulf %88, %92 : vector<8x128xf32>
    %94 = arith.truncf %93 : vector<8x128xf32> to vector<8x128xbf16>
    %95 = arith.index_cast %c1_i32 : i32 to index
    %c0_43 = arith.constant 0 : index
    %c0_44 = arith.constant 0 : index
    %96 = vector.load %arg16[%95, %c0_43, %c0_44] : memref<8x8x128xbf16, #tpu.memory_space<vmem>>, vector<1x8x128xbf16>
    %97 = vector.shape_cast %96 : vector<1x8x128xbf16> to vector<8x128xbf16>
    %98 = vector.shape_cast %94 : vector<8x128xbf16> to vector<1x8x128xbf16>
    tpu.vector_store %arg16[%95, %c0_43, %c0_44], %98 {strides = array<i32>} : memref<8x8x128xbf16, #tpu.memory_space<vmem>>, vector<1x8x128xbf16>,
    %c2_i32 = arith.constant 2 : i32
    %99 = arith.index_cast %c2_i32 : i32 to index
    %c0_45 = arith.constant 0 : index
    %c0_46 = arith.constant 0 : index
    %100 = vector.load %arg15[%99, %c0_45, %c0_46] : memref<8x8x512xf32, #tpu.memory_space<vmem>>, vector<1x8x512xf32>
    %101 = vector.shape_cast %100 : vector<1x8x512xf32> to vector<8x512xf32>
    %102 = arith.truncf %93 : vector<8x128xf32> to vector<8x128xbf16>
    %cst_47 = arith.constant dense<0.000000e+00> : vector<8x512xf32>
    %103 = tpu.matmul %102, %12, %cst_47 {dimension_numbers = #tpu.dot_dimension_numbers<[1], [0], [0], [1], [0, 0, 1, 1], [], []>} : vector<8x128xbf16>, vector<128x512xbf16>, vector<8x512xf32> -> vector<8x512xf32>
    %104 = arith.addf %101, %103 : vector<8x512xf32>
    %105 = vector.extract_strided_slice %104 {offsets = [0, 0], sizes = [8, 128], strides = [1, 1]} : vector<8x512xf32> to vector<8x128xf32>
    %cst_48 = arith.constant 5.000000e-01 : f32
    %106 = vector.broadcast %cst_48 : f32 to vector<8x128xf32>
    %107 = arith.mulf %106, %105 : vector<8x128xf32>
    %108 = math.tanh %107 : vector<8x128xf32>
    %cst_49 = arith.constant 5.000000e-01 : f32
    %109 = vector.broadcast %cst_49 : f32 to vector<8x128xf32>
    %110 = arith.mulf %109, %108 : vector<8x128xf32>
    %cst_50 = arith.constant 5.000000e-01 : f32
    %111 = vector.broadcast %cst_50 : f32 to vector<8x128xf32>
    %112 = arith.addf %110, %111 : vector<8x128xf32>
    %113 = vector.extract_strided_slice %104 {offsets = [0, 128], sizes = [8, 128], strides = [1, 1]} : vector<8x512xf32> to vector<8x128xf32>
    %cst_51 = arith.constant 5.000000e-01 : f32
    %114 = vector.broadcast %cst_51 : f32 to vector<8x128xf32>
    %115 = arith.mulf %114, %113 : vector<8x128xf32>
    %116 = math.tanh %115 : vector<8x128xf32>
    %cst_52 = arith.constant 5.000000e-01 : f32
    %117 = vector.broadcast %cst_52 : f32 to vector<8x128xf32>
    %118 = arith.mulf %117, %116 : vector<8x128xf32>
    %cst_53 = arith.constant 5.000000e-01 : f32
    %119 = vector.broadcast %cst_53 : f32 to vector<8x128xf32>
    %120 = arith.addf %118, %119 : vector<8x128xf32>
    %121 = vector.extract_strided_slice %104 {offsets = [0, 256], sizes = [8, 128], strides = [1, 1]} : vector<8x512xf32> to vector<8x128xf32>
    %122 = math.tanh %121 : vector<8x128xf32>
    %123 = vector.extract_strided_slice %104 {offsets = [0, 384], sizes = [8, 128], strides = [1, 1]} : vector<8x512xf32> to vector<8x128xf32>
    %cst_54 = arith.constant 5.000000e-01 : f32
    %124 = vector.broadcast %cst_54 : f32 to vector<8x128xf32>
    %125 = arith.mulf %124, %123 : vector<8x128xf32>
    %126 = math.tanh %125 : vector<8x128xf32>
    %cst_55 = arith.constant 5.000000e-01 : f32
    %127 = vector.broadcast %cst_55 : f32 to vector<8x128xf32>
    %128 = arith.mulf %127, %126 : vector<8x128xf32>
    %cst_56 = arith.constant 5.000000e-01 : f32
    %129 = vector.broadcast %cst_56 : f32 to vector<8x128xf32>
    %130 = arith.addf %128, %129 : vector<8x128xf32>
    %131 = arith.mulf %120, %91 : vector<8x128xf32>
    %132 = arith.mulf %112, %122 : vector<8x128xf32>
    %133 = arith.addf %131, %132 : vector<8x128xf32>
    %134 = math.tanh %133 : vector<8x128xf32>
    %135 = arith.mulf %130, %134 : vector<8x128xf32>
    %136 = arith.truncf %135 : vector<8x128xf32> to vector<8x128xbf16>
    %137 = arith.index_cast %c2_i32 : i32 to index
    %c0_57 = arith.constant 0 : index
    %c0_58 = arith.constant 0 : index
    %138 = vector.load %arg16[%137, %c0_57, %c0_58] : memref<8x8x128xbf16, #tpu.memory_space<vmem>>, vector<1x8x128xbf16>
    %139 = vector.shape_cast %138 : vector<1x8x128xbf16> to vector<8x128xbf16>
    %140 = vector.shape_cast %136 : vector<8x128xbf16> to vector<1x8x128xbf16>
    tpu.vector_store %arg16[%137, %c0_57, %c0_58], %140 {strides = array<i32>} : memref<8x8x128xbf16, #tpu.memory_space<vmem>>, vector<1x8x128xbf16>,
    %c3_i32 = arith.constant 3 : i32
    %141 = arith.index_cast %c3_i32 : i32 to index
    %c0_59 = arith.constant 0 : index
    %c0_60 = arith.constant 0 : index
    %142 = vector.load %arg15[%141, %c0_59, %c0_60] : memref<8x8x512xf32, #tpu.memory_space<vmem>>, vector<1x8x512xf32>
    %143 = vector.shape_cast %142 : vector<1x8x512xf32> to vector<8x512xf32>
    %144 = arith.truncf %135 : vector<8x128xf32> to vector<8x128xbf16>
    %cst_61 = arith.constant dense<0.000000e+00> : vector<8x512xf32>
    %145 = tpu.matmul %144, %12, %cst_61 {dimension_numbers = #tpu.dot_dimension_numbers<[1], [0], [0], [1], [0, 0, 1, 1], [], []>} : vector<8x128xbf16>, vector<128x512xbf16>, vector<8x512xf32> -> vector<8x512xf32>
    %146 = arith.addf %143, %145 : vector<8x512xf32>
    %147 = vector.extract_strided_slice %146 {offsets = [0, 0], sizes = [8, 128], strides = [1, 1]} : vector<8x512xf32> to vector<8x128xf32>
    %cst_62 = arith.constant 5.000000e-01 : f32
    %148 = vector.broadcast %cst_62 : f32 to vector<8x128xf32>
    %149 = arith.mulf %148, %147 : vector<8x128xf32>
    %150 = math.tanh %149 : vector<8x128xf32>
    %cst_63 = arith.constant 5.000000e-01 : f32
    %151 = vector.broadcast %cst_63 : f32 to vector<8x128xf32>
    %152 = arith.mulf %151, %150 : vector<8x128xf32>
    %cst_64 = arith.constant 5.000000e-01 : f32
    %153 = vector.broadcast %cst_64 : f32 to vector<8x128xf32>
    %154 = arith.addf %152, %153 : vector<8x128xf32>
    %155 = vector.extract_strided_slice %146 {offsets = [0, 128], sizes = [8, 128], strides = [1, 1]} : vector<8x512xf32> to vector<8x128xf32>
    %cst_65 = arith.constant 5.000000e-01 : f32
    %156 = vector.broadcast %cst_65 : f32 to vector<8x128xf32>
    %157 = arith.mulf %156, %155 : vector<8x128xf32>
    %158 = math.tanh %157 : vector<8x128xf32>
    %cst_66 = arith.constant 5.000000e-01 : f32
    %159 = vector.broadcast %cst_66 : f32 to vector<8x128xf32>
    %160 = arith.mulf %159, %158 : vector<8x128xf32>
    %cst_67 = arith.constant 5.000000e-01 : f32
    %161 = vector.broadcast %cst_67 : f32 to vector<8x128xf32>
    %162 = arith.addf %160, %161 : vector<8x128xf32>
    %163 = vector.extract_strided_slice %146 {offsets = [0, 256], sizes = [8, 128], strides = [1, 1]} : vector<8x512xf32> to vector<8x128xf32>
    %164 = math.tanh %163 : vector<8x128xf32>
    %165 = vector.extract_strided_slice %146 {offsets = [0, 384], sizes = [8, 128], strides = [1, 1]} : vector<8x512xf32> to vector<8x128xf32>
    %cst_68 = arith.constant 5.000000e-01 : f32
    %166 = vector.broadcast %cst_68 : f32 to vector<8x128xf32>
    %167 = arith.mulf %166, %165 : vector<8x128xf32>
    %168 = math.tanh %167 : vector<8x128xf32>
    %cst_69 = arith.constant 5.000000e-01 : f32
    %169 = vector.broadcast %cst_69 : f32 to vector<8x128xf32>
    %170 = arith.mulf %169, %168 : vector<8x128xf32>
    %cst_70 = arith.constant 5.000000e-01 : f32
    %171 = vector.broadcast %cst_70 : f32 to vector<8x128xf32>
    %172 = arith.addf %170, %171 : vector<8x128xf32>
    %173 = arith.mulf %162, %133 : vector<8x128xf32>
    %174 = arith.mulf %154, %164 : vector<8x128xf32>
    %175 = arith.addf %173, %174 : vector<8x128xf32>
    %176 = math.tanh %175 : vector<8x128xf32>
    %177 = arith.mulf %172, %176 : vector<8x128xf32>
    %178 = arith.truncf %177 : vector<8x128xf32> to vector<8x128xbf16>
    %179 = arith.index_cast %c3_i32 : i32 to index
    %c0_71 = arith.constant 0 : index
    %c0_72 = arith.constant 0 : index
    %180 = vector.load %arg16[%179, %c0_71, %c0_72] : memref<8x8x128xbf16, #tpu.memory_space<vmem>>, vector<1x8x128xbf16>
    %181 = vector.shape_cast %180 : vector<1x8x128xbf16> to vector<8x128xbf16>
    %182 = vector.shape_cast %178 : vector<8x128xbf16> to vector<1x8x128xbf16>
    tpu.vector_store %arg16[%179, %c0_71, %c0_72], %182 {strides = array<i32>} : memref<8x8x128xbf16, #tpu.memory_space<vmem>>, vector<1x8x128xbf16>,
    %c4_i32 = arith.constant 4 : i32
    %183 = arith.index_cast %c4_i32 : i32 to index
    %c0_73 = arith.constant 0 : index
    %c0_74 = arith.constant 0 : index
    %184 = vector.load %arg15[%183, %c0_73, %c0_74] : memref<8x8x512xf32, #tpu.memory_space<vmem>>, vector<1x8x512xf32>
    %185 = vector.shape_cast %184 : vector<1x8x512xf32> to vector<8x512xf32>
    %186 = arith.truncf %177 : vector<8x128xf32> to vector<8x128xbf16>
    %cst_75 = arith.constant dense<0.000000e+00> : vector<8x512xf32>
    %187 = tpu.matmul %186, %12, %cst_75 {dimension_numbers = #tpu.dot_dimension_numbers<[1], [0], [0], [1], [0, 0, 1, 1], [], []>} : vector<8x128xbf16>, vector<128x512xbf16>, vector<8x512xf32> -> vector<8x512xf32>
    %188 = arith.addf %185, %187 : vector<8x512xf32>
    %189 = vector.extract_strided_slice %188 {offsets = [0, 0], sizes = [8, 128], strides = [1, 1]} : vector<8x512xf32> to vector<8x128xf32>
    %cst_76 = arith.constant 5.000000e-01 : f32
    %190 = vector.broadcast %cst_76 : f32 to vector<8x128xf32>
    %191 = arith.mulf %190, %189 : vector<8x128xf32>
    %192 = math.tanh %191 : vector<8x128xf32>
    %cst_77 = arith.constant 5.000000e-01 : f32
    %193 = vector.broadcast %cst_77 : f32 to vector<8x128xf32>
    %194 = arith.mulf %193, %192 : vector<8x128xf32>
    %cst_78 = arith.constant 5.000000e-01 : f32
    %195 = vector.broadcast %cst_78 : f32 to vector<8x128xf32>
    %196 = arith.addf %194, %195 : vector<8x128xf32>
    %197 = vector.extract_strided_slice %188 {offsets = [0, 128], sizes = [8, 128], strides = [1, 1]} : vector<8x512xf32> to vector<8x128xf32>
    %cst_79 = arith.constant 5.000000e-01 : f32
    %198 = vector.broadcast %cst_79 : f32 to vector<8x128xf32>
    %199 = arith.mulf %198, %197 : vector<8x128xf32>
    %200 = math.tanh %199 : vector<8x128xf32>
    %cst_80 = arith.constant 5.000000e-01 : f32
    %201 = vector.broadcast %cst_80 : f32 to vector<8x128xf32>
    %202 = arith.mulf %201, %200 : vector<8x128xf32>
    %cst_81 = arith.constant 5.000000e-01 : f32
    %203 = vector.broadcast %cst_81 : f32 to vector<8x128xf32>
    %204 = arith.addf %202, %203 : vector<8x128xf32>
    %205 = vector.extract_strided_slice %188 {offsets = [0, 256], sizes = [8, 128], strides = [1, 1]} : vector<8x512xf32> to vector<8x128xf32>
    %206 = math.tanh %205 : vector<8x128xf32>
    %207 = vector.extract_strided_slice %188 {offsets = [0, 384], sizes = [8, 128], strides = [1, 1]} : vector<8x512xf32> to vector<8x128xf32>
    %cst_82 = arith.constant 5.000000e-01 : f32
    %208 = vector.broadcast %cst_82 : f32 to vector<8x128xf32>
    %209 = arith.mulf %208, %207 : vector<8x128xf32>
    %210 = math.tanh %209 : vector<8x128xf32>
    %cst_83 = arith.constant 5.000000e-01 : f32
    %211 = vector.broadcast %cst_83 : f32 to vector<8x128xf32>
    %212 = arith.mulf %211, %210 : vector<8x128xf32>
    %cst_84 = arith.constant 5.000000e-01 : f32
    %213 = vector.broadcast %cst_84 : f32 to vector<8x128xf32>
    %214 = arith.addf %212, %213 : vector<8x128xf32>
    %215 = arith.mulf %204, %175 : vector<8x128xf32>
    %216 = arith.mulf %196, %206 : vector<8x128xf32>
    %217 = arith.addf %215, %216 : vector<8x128xf32>
    %218 = math.tanh %217 : vector<8x128xf32>
    %219 = arith.mulf %214, %218 : vector<8x128xf32>
    %220 = arith.truncf %219 : vector<8x128xf32> to vector<8x128xbf16>
    %221 = arith.index_cast %c4_i32 : i32 to index
    %c0_85 = arith.constant 0 : index
    %c0_86 = arith.constant 0 : index
    %222 = vector.load %arg16[%221, %c0_85, %c0_86] : memref<8x8x128xbf16, #tpu.memory_space<vmem>>, vector<1x8x128xbf16>
    %223 = vector.shape_cast %222 : vector<1x8x128xbf16> to vector<8x128xbf16>
    %224 = vector.shape_cast %220 : vector<8x128xbf16> to vector<1x8x128xbf16>
    tpu.vector_store %arg16[%221, %c0_85, %c0_86], %224 {strides = array<i32>} : memref<8x8x128xbf16, #tpu.memory_space<vmem>>, vector<1x8x128xbf16>,
    %c5_i32 = arith.constant 5 : i32
    %225 = arith.index_cast %c5_i32 : i32 to index
    %c0_87 = arith.constant 0 : index
    %c0_88 = arith.constant 0 : index
    %226 = vector.load %arg15[%225, %c0_87, %c0_88] : memref<8x8x512xf32, #tpu.memory_space<vmem>>, vector<1x8x512xf32>
    %227 = vector.shape_cast %226 : vector<1x8x512xf32> to vector<8x512xf32>
    %228 = arith.truncf %219 : vector<8x128xf32> to vector<8x128xbf16>
    %cst_89 = arith.constant dense<0.000000e+00> : vector<8x512xf32>
    %229 = tpu.matmul %228, %12, %cst_89 {dimension_numbers = #tpu.dot_dimension_numbers<[1], [0], [0], [1], [0, 0, 1, 1], [], []>} : vector<8x128xbf16>, vector<128x512xbf16>, vector<8x512xf32> -> vector<8x512xf32>
    %230 = arith.addf %227, %229 : vector<8x512xf32>
    %231 = vector.extract_strided_slice %230 {offsets = [0, 0], sizes = [8, 128], strides = [1, 1]} : vector<8x512xf32> to vector<8x128xf32>
    %cst_90 = arith.constant 5.000000e-01 : f32
    %232 = vector.broadcast %cst_90 : f32 to vector<8x128xf32>
    %233 = arith.mulf %232, %231 : vector<8x128xf32>
    %234 = math.tanh %233 : vector<8x128xf32>
    %cst_91 = arith.constant 5.000000e-01 : f32
    %235 = vector.broadcast %cst_91 : f32 to vector<8x128xf32>
    %236 = arith.mulf %235, %234 : vector<8x128xf32>
    %cst_92 = arith.constant 5.000000e-01 : f32
    %237 = vector.broadcast %cst_92 : f32 to vector<8x128xf32>
    %238 = arith.addf %236, %237 : vector<8x128xf32>
    %239 = vector.extract_strided_slice %230 {offsets = [0, 128], sizes = [8, 128], strides = [1, 1]} : vector<8x512xf32> to vector<8x128xf32>
    %cst_93 = arith.constant 5.000000e-01 : f32
    %240 = vector.broadcast %cst_93 : f32 to vector<8x128xf32>
    %241 = arith.mulf %240, %239 : vector<8x128xf32>
    %242 = math.tanh %241 : vector<8x128xf32>
    %cst_94 = arith.constant 5.000000e-01 : f32
    %243 = vector.broadcast %cst_94 : f32 to vector<8x128xf32>
    %244 = arith.mulf %243, %242 : vector<8x128xf32>
    %cst_95 = arith.constant 5.000000e-01 : f32
    %245 = vector.broadcast %cst_95 : f32 to vector<8x128xf32>
    %246 = arith.addf %244, %245 : vector<8x128xf32>
    %247 = vector.extract_strided_slice %230 {offsets = [0, 256], sizes = [8, 128], strides = [1, 1]} : vector<8x512xf32> to vector<8x128xf32>
    %248 = math.tanh %247 : vector<8x128xf32>
    %249 = vector.extract_strided_slice %230 {offsets = [0, 384], sizes = [8, 128], strides = [1, 1]} : vector<8x512xf32> to vector<8x128xf32>
    %cst_96 = arith.constant 5.000000e-01 : f32
    %250 = vector.broadcast %cst_96 : f32 to vector<8x128xf32>
    %251 = arith.mulf %250, %249 : vector<8x128xf32>
    %252 = math.tanh %251 : vector<8x128xf32>
    %cst_97 = arith.constant 5.000000e-01 : f32
    %253 = vector.broadcast %cst_97 : f32 to vector<8x128xf32>
    %254 = arith.mulf %253, %252 : vector<8x128xf32>
    %cst_98 = arith.constant 5.000000e-01 : f32
    %255 = vector.broadcast %cst_98 : f32 to vector<8x128xf32>
    %256 = arith.addf %254, %255 : vector<8x128xf32>
    %257 = arith.mulf %246, %217 : vector<8x128xf32>
    %258 = arith.mulf %238, %248 : vector<8x128xf32>
    %259 = arith.addf %257, %258 : vector<8x128xf32>
    %260 = math.tanh %259 : vector<8x128xf32>
    %261 = arith.mulf %256, %260 : vector<8x128xf32>
    %262 = arith.truncf %261 : vector<8x128xf32> to vector<8x128xbf16>
    %263 = arith.index_cast %c5_i32 : i32 to index
    %c0_99 = arith.constant 0 : index
    %c0_100 = arith.constant 0 : index
    %264 = vector.load %arg16[%263, %c0_99, %c0_100] : memref<8x8x128xbf16, #tpu.memory_space<vmem>>, vector<1x8x128xbf16>
    %265 = vector.shape_cast %264 : vector<1x8x128xbf16> to vector<8x128xbf16>
    %266 = vector.shape_cast %262 : vector<8x128xbf16> to vector<1x8x128xbf16>
    tpu.vector_store %arg16[%263, %c0_99, %c0_100], %266 {strides = array<i32>} : memref<8x8x128xbf16, #tpu.memory_space<vmem>>, vector<1x8x128xbf16>,
    %c6_i32 = arith.constant 6 : i32
    %267 = arith.index_cast %c6_i32 : i32 to index
    %c0_101 = arith.constant 0 : index
    %c0_102 = arith.constant 0 : index
    %268 = vector.load %arg15[%267, %c0_101, %c0_102] : memref<8x8x512xf32, #tpu.memory_space<vmem>>, vector<1x8x512xf32>
    %269 = vector.shape_cast %268 : vector<1x8x512xf32> to vector<8x512xf32>
    %270 = arith.truncf %261 : vector<8x128xf32> to vector<8x128xbf16>
    %cst_103 = arith.constant dense<0.000000e+00> : vector<8x512xf32>
    %271 = tpu.matmul %270, %12, %cst_103 {dimension_numbers = #tpu.dot_dimension_numbers<[1], [0], [0], [1], [0, 0, 1, 1], [], []>} : vector<8x128xbf16>, vector<128x512xbf16>, vector<8x512xf32> -> vector<8x512xf32>
    %272 = arith.addf %269, %271 : vector<8x512xf32>
    %273 = vector.extract_strided_slice %272 {offsets = [0, 0], sizes = [8, 128], strides = [1, 1]} : vector<8x512xf32> to vector<8x128xf32>
    %cst_104 = arith.constant 5.000000e-01 : f32
    %274 = vector.broadcast %cst_104 : f32 to vector<8x128xf32>
    %275 = arith.mulf %274, %273 : vector<8x128xf32>
    %276 = math.tanh %275 : vector<8x128xf32>
    %cst_105 = arith.constant 5.000000e-01 : f32
    %277 = vector.broadcast %cst_105 : f32 to vector<8x128xf32>
    %278 = arith.mulf %277, %276 : vector<8x128xf32>
    %cst_106 = arith.constant 5.000000e-01 : f32
    %279 = vector.broadcast %cst_106 : f32 to vector<8x128xf32>
    %280 = arith.addf %278, %279 : vector<8x128xf32>
    %281 = vector.extract_strided_slice %272 {offsets = [0, 128], sizes = [8, 128], strides = [1, 1]} : vector<8x512xf32> to vector<8x128xf32>
    %cst_107 = arith.constant 5.000000e-01 : f32
    %282 = vector.broadcast %cst_107 : f32 to vector<8x128xf32>
    %283 = arith.mulf %282, %281 : vector<8x128xf32>
    %284 = math.tanh %283 : vector<8x128xf32>
    %cst_108 = arith.constant 5.000000e-01 : f32
    %285 = vector.broadcast %cst_108 : f32 to vector<8x128xf32>
    %286 = arith.mulf %285, %284 : vector<8x128xf32>
    %cst_109 = arith.constant 5.000000e-01 : f32
    %287 = vector.broadcast %cst_109 : f32 to vector<8x128xf32>
    %288 = arith.addf %286, %287 : vector<8x128xf32>
    %289 = vector.extract_strided_slice %272 {offsets = [0, 256], sizes = [8, 128], strides = [1, 1]} : vector<8x512xf32> to vector<8x128xf32>
    %290 = math.tanh %289 : vector<8x128xf32>
    %291 = vector.extract_strided_slice %272 {offsets = [0, 384], sizes = [8, 128], strides = [1, 1]} : vector<8x512xf32> to vector<8x128xf32>
    %cst_110 = arith.constant 5.000000e-01 : f32
    %292 = vector.broadcast %cst_110 : f32 to vector<8x128xf32>
    %293 = arith.mulf %292, %291 : vector<8x128xf32>
    %294 = math.tanh %293 : vector<8x128xf32>
    %cst_111 = arith.constant 5.000000e-01 : f32
    %295 = vector.broadcast %cst_111 : f32 to vector<8x128xf32>
    %296 = arith.mulf %295, %294 : vector<8x128xf32>
    %cst_112 = arith.constant 5.000000e-01 : f32
    %297 = vector.broadcast %cst_112 : f32 to vector<8x128xf32>
    %298 = arith.addf %296, %297 : vector<8x128xf32>
    %299 = arith.mulf %288, %259 : vector<8x128xf32>
    %300 = arith.mulf %280, %290 : vector<8x128xf32>
    %301 = arith.addf %299, %300 : vector<8x128xf32>
    %302 = math.tanh %301 : vector<8x128xf32>
    %303 = arith.mulf %298, %302 : vector<8x128xf32>
    %304 = arith.truncf %303 : vector<8x128xf32> to vector<8x128xbf16>
    %305 = arith.index_cast %c6_i32 : i32 to index
    %c0_113 = arith.constant 0 : index
    %c0_114 = arith.constant 0 : index
    %306 = vector.load %arg16[%305, %c0_113, %c0_114] : memref<8x8x128xbf16, #tpu.memory_space<vmem>>, vector<1x8x128xbf16>
    %307 = vector.shape_cast %306 : vector<1x8x128xbf16> to vector<8x128xbf16>
    %308 = vector.shape_cast %304 : vector<8x128xbf16> to vector<1x8x128xbf16>
    tpu.vector_store %arg16[%305, %c0_113, %c0_114], %308 {strides = array<i32>} : memref<8x8x128xbf16, #tpu.memory_space<vmem>>, vector<1x8x128xbf16>,
    %c7_i32 = arith.constant 7 : i32
    %309 = arith.index_cast %c7_i32 : i32 to index
    %c0_115 = arith.constant 0 : index
    %c0_116 = arith.constant 0 : index
    %310 = vector.load %arg15[%309, %c0_115, %c0_116] : memref<8x8x512xf32, #tpu.memory_space<vmem>>, vector<1x8x512xf32>
    %311 = vector.shape_cast %310 : vector<1x8x512xf32> to vector<8x512xf32>
    %312 = arith.truncf %303 : vector<8x128xf32> to vector<8x128xbf16>
    %cst_117 = arith.constant dense<0.000000e+00> : vector<8x512xf32>
    %313 = tpu.matmul %312, %12, %cst_117 {dimension_numbers = #tpu.dot_dimension_numbers<[1], [0], [0], [1], [0, 0, 1, 1], [], []>} : vector<8x128xbf16>, vector<128x512xbf16>, vector<8x512xf32> -> vector<8x512xf32>
    %314 = arith.addf %311, %313 : vector<8x512xf32>
    %315 = vector.extract_strided_slice %314 {offsets = [0, 0], sizes = [8, 128], strides = [1, 1]} : vector<8x512xf32> to vector<8x128xf32>
    %cst_118 = arith.constant 5.000000e-01 : f32
    %316 = vector.broadcast %cst_118 : f32 to vector<8x128xf32>
    %317 = arith.mulf %316, %315 : vector<8x128xf32>
    %318 = math.tanh %317 : vector<8x128xf32>
    %cst_119 = arith.constant 5.000000e-01 : f32
    %319 = vector.broadcast %cst_119 : f32 to vector<8x128xf32>
    %320 = arith.mulf %319, %318 : vector<8x128xf32>
    %cst_120 = arith.constant 5.000000e-01 : f32
    %321 = vector.broadcast %cst_120 : f32 to vector<8x128xf32>
    %322 = arith.addf %320, %321 : vector<8x128xf32>
    %323 = vector.extract_strided_slice %314 {offsets = [0, 128], sizes = [8, 128], strides = [1, 1]} : vector<8x512xf32> to vector<8x128xf32>
    %cst_121 = arith.constant 5.000000e-01 : f32
    %324 = vector.broadcast %cst_121 : f32 to vector<8x128xf32>
    %325 = arith.mulf %324, %323 : vector<8x128xf32>
    %326 = math.tanh %325 : vector<8x128xf32>
    %cst_122 = arith.constant 5.000000e-01 : f32
    %327 = vector.broadcast %cst_122 : f32 to vector<8x128xf32>
    %328 = arith.mulf %327, %326 : vector<8x128xf32>
    %cst_123 = arith.constant 5.000000e-01 : f32
    %329 = vector.broadcast %cst_123 : f32 to vector<8x128xf32>
    %330 = arith.addf %328, %329 : vector<8x128xf32>
    %331 = vector.extract_strided_slice %314 {offsets = [0, 256], sizes = [8, 128], strides = [1, 1]} : vector<8x512xf32> to vector<8x128xf32>
    %332 = math.tanh %331 : vector<8x128xf32>
    %333 = vector.extract_strided_slice %314 {offsets = [0, 384], sizes = [8, 128], strides = [1, 1]} : vector<8x512xf32> to vector<8x128xf32>
    %cst_124 = arith.constant 5.000000e-01 : f32
    %334 = vector.broadcast %cst_124 : f32 to vector<8x128xf32>
    %335 = arith.mulf %334, %333 : vector<8x128xf32>
    %336 = math.tanh %335 : vector<8x128xf32>
    %cst_125 = arith.constant 5.000000e-01 : f32
    %337 = vector.broadcast %cst_125 : f32 to vector<8x128xf32>
    %338 = arith.mulf %337, %336 : vector<8x128xf32>
    %cst_126 = arith.constant 5.000000e-01 : f32
    %339 = vector.broadcast %cst_126 : f32 to vector<8x128xf32>
    %340 = arith.addf %338, %339 : vector<8x128xf32>
    %341 = arith.mulf %330, %301 : vector<8x128xf32>
    %342 = arith.mulf %322, %332 : vector<8x128xf32>
    %343 = arith.addf %341, %342 : vector<8x128xf32>
    %344 = math.tanh %343 : vector<8x128xf32>
    %345 = arith.mulf %340, %344 : vector<8x128xf32>
    %346 = arith.truncf %345 : vector<8x128xf32> to vector<8x128xbf16>
    %347 = arith.index_cast %c7_i32 : i32 to index
    %c0_127 = arith.constant 0 : index
    %c0_128 = arith.constant 0 : index
    %348 = vector.load %arg16[%347, %c0_127, %c0_128] : memref<8x8x128xbf16, #tpu.memory_space<vmem>>, vector<1x8x128xbf16>
    %349 = vector.shape_cast %348 : vector<1x8x128xbf16> to vector<8x128xbf16>
    %350 = vector.shape_cast %346 : vector<8x128xbf16> to vector<1x8x128xbf16>
    tpu.vector_store %arg16[%347, %c0_127, %c0_128], %350 {strides = array<i32>} : memref<8x8x128xbf16, #tpu.memory_space<vmem>>, vector<1x8x128xbf16>,
    %c8_i32 = arith.constant 8 : i32
    %c0_i32_129 = arith.constant 0 : i32
    %351 = arith.cmpi ne, %arg1, %c0_i32_129 : i32
    %352 = arith.extui %351 : i1 to i32
    %c0_i32_130 = arith.constant 0 : i32
    %353 = arith.cmpi ne, %352, %c0_i32_130 : i32
    scf.if %353 {
      %c0_144 = arith.constant 0 : index
      %c0_145 = arith.constant 0 : index
      %366 = vector.load %arg13[%c0_144, %c0_145] : memref<8x128xf32, #tpu.memory_space<vmem>>, vector<8x128xf32>
      tpu.vector_store %arg13[%c0_144, %c0_145], %345 {strides = array<i32>} : memref<8x128xf32, #tpu.memory_space<vmem>>, vector<8x128xf32>,
      %c0_146 = arith.constant 0 : index
      %c0_147 = arith.constant 0 : index
      %367 = vector.load %arg14[%c0_146, %c0_147] : memref<8x128xf32, #tpu.memory_space<vmem>>, vector<8x128xf32>
      tpu.vector_store %arg14[%c0_146, %c0_147], %343 {strides = array<i32>} : memref<8x128xf32, #tpu.memory_space<vmem>>, vector<8x128xf32>,
    } else {
    }
    %c0_131 = arith.constant 0 : index
    %c0_132 = arith.constant 0 : index
    %c0_133 = arith.constant 0 : index
    %354 = vector.load %arg16[%c0_131, %c0_132, %c0_133] : memref<8x8x128xbf16, #tpu.memory_space<vmem>>, vector<8x8x128xbf16>
    %355 = vector.shape_cast %354 : vector<8x8x128xbf16> to vector<64x128xbf16>
    %c0_134 = arith.constant 0 : index
    %c0_135 = arith.constant 0 : index
    %356 = vector.load %arg8[%c0_134, %c0_135] : memref<128x128xbf16, #tpu.memory_space<vmem>>, vector<128x128xbf16>
    %cst_136 = arith.constant dense<0.000000e+00> : vector<64x128xf32>
    %357 = tpu.matmul %355, %356, %cst_136 {dimension_numbers = #tpu.dot_dimension_numbers<[1], [0], [0], [1], [0, 0, 1, 1], [], []>} : vector<64x128xbf16>, vector<128x128xbf16>, vector<64x128xf32> -> vector<64x128xf32>
    %c0_137 = arith.constant 0 : index
    %c0_138 = arith.constant 0 : index
    %358 = vector.load %arg9[%c0_137, %c0_138] : memref<1x128xf32, #tpu.memory_space<vmem>>, vector<1x128xf32>
    %359 = vector.broadcast %358 : vector<1x128xf32> to vector<64x128xf32>
    %360 = arith.addf %357, %359 : vector<64x128xf32>
    %361 = vector.shape_cast %360 : vector<64x128xf32> to vector<8x8x128xf32>
    %c0_139 = arith.constant 0 : index
    %c0_140 = arith.constant 0 : index
    %c0_141 = arith.constant 0 : index
    %362 = vector.load %arg10[%c0_139, %c0_140, %c0_141] : memref<8x8x128xf32, #tpu.memory_space<vmem>>, vector<8x8x128xf32>
    tpu.vector_store %arg10[%c0_139, %c0_140, %c0_141], %361 {strides = array<i32>} : memref<8x8x128xf32, #tpu.memory_space<vmem>>, vector<8x8x128xf32>,
    %c0_i32_142 = arith.constant 0 : i32
    %363 = arith.cmpi eq, %arg1, %c0_i32_142 : i32
    %364 = arith.extui %363 : i1 to i32
    %c0_i32_143 = arith.constant 0 : i32
    %365 = arith.cmpi ne, %364, %c0_i32_143 : i32
    scf.if %365 {
      %c0_144 = arith.constant 0 : index
      %c0_145 = arith.constant 0 : index
      %366 = vector.load %arg11[%c0_144, %c0_145] : memref<8x128xf32, #tpu.memory_space<vmem>>, vector<8x128xf32>
      tpu.vector_store %arg11[%c0_144, %c0_145], %345 {strides = array<i32>} : memref<8x128xf32, #tpu.memory_space<vmem>>, vector<8x128xf32>,
      %c0_146 = arith.constant 0 : index
      %c0_147 = arith.constant 0 : index
      %367 = vector.load %arg12[%c0_146, %c0_147] : memref<8x128xf32, #tpu.memory_space<vmem>>, vector<8x128xf32>
      tpu.vector_store %arg12[%c0_146, %c0_147], %343 {strides = array<i32>} : memref<8x128xf32, #tpu.memory_space<vmem>>, vector<8x128xf32>,
    } else {
    }
    return
  }
  func.func @transform_0(%arg0: i32, %arg1: i32) -> (i32, i32, i32) {
    %c0_i32 = arith.constant 0 : i32
    %c0_i32_0 = arith.constant 0 : i32
    return %arg1, %arg0, %c0_i32 : i32, i32, i32
  }
  func.func @transform_1(%arg0: i32, %arg1: i32) -> (i32, i32) {
    %c0_i32 = arith.constant 0 : i32
    %c0_i32_0 = arith.constant 0 : i32
    return %arg0, %c0_i32 : i32, i32
  }
  func.func @transform_2(%arg0: i32, %arg1: i32) -> (i32, i32) {
    %c0_i32 = arith.constant 0 : i32
    %c0_i32_0 = arith.constant 0 : i32
    return %arg0, %c0_i32 : i32, i32
  }
  func.func @transform_3(%arg0: i32, %arg1: i32) -> (i32, i32) {
    %c0_i32 = arith.constant 0 : i32
    %c0_i32_0 = arith.constant 0 : i32
    %c0_i32_1 = arith.constant 0 : i32
    return %c0_i32, %c0_i32_0 : i32, i32
  }
  func.func @transform_4(%arg0: i32, %arg1: i32) -> (i32, i32) {
    %c0_i32 = arith.constant 0 : i32
    %c0_i32_0 = arith.constant 0 : i32
    %c0_i32_1 = arith.constant 0 : i32
    return %c0_i32, %c0_i32_0 : i32, i32
  }
  func.func @transform_5(%arg0: i32, %arg1: i32) -> (i32, i32) {
    %c0_i32 = arith.constant 0 : i32
    %c0_i32_0 = arith.constant 0 : i32
    %c0_i32_1 = arith.constant 0 : i32
    return %c0_i32, %c0_i32_0 : i32, i32
  }
  func.func @transform_6(%arg0: i32, %arg1: i32) -> (i32, i32) {
    %c0_i32 = arith.constant 0 : i32
    %c0_i32_0 = arith.constant 0 : i32
    %c0_i32_1 = arith.constant 0 : i32
    return %c0_i32, %c0_i32_0 : i32, i32
  }
  func.func @transform_7(%arg0: i32, %arg1: i32) -> (i32, i32) {
    %c0_i32 = arith.constant 0 : i32
    %c0_i32_0 = arith.constant 0 : i32
    %c0_i32_1 = arith.constant 0 : i32
    return %c0_i32, %c0_i32_0 : i32, i32
  }
  func.func @transform_8(%arg0: i32, %arg1: i32) -> (i32, i32, i32) {
    %c0_i32 = arith.constant 0 : i32
    %c0_i32_0 = arith.constant 0 : i32
    return %arg1, %arg0, %c0_i32 : i32, i32, i32
  }
  func.func @transform_9(%arg0: i32, %arg1: i32) -> (i32, i32) {
    %c0_i32 = arith.constant 0 : i32
    %c0_i32_0 = arith.constant 0 : i32
    return %arg0, %c0_i32 : i32, i32
  }
  func.func @transform_10(%arg0: i32, %arg1: i32) -> (i32, i32) {
    %c0_i32 = arith.constant 0 : i32
    %c0_i32_0 = arith.constant 0 : i32
    return %arg0, %c0_i32 : i32, i32
  }
}

</mosaic_0001>

<llo_original>
// kernel: sequence_net_forward.1
$region0: #{sequence_net_forward.1}
  #allocation0 [shape = 'u32[]', space=smem, size = 0x4, offset = 0x4, fixed_abs, tag = 'smem constant byte address 0x4 - core index']
  #allocation1 [shape = 'u32[144,128]{1,0:T(1,128)}', space=vmem, size = 0x12000, scoped, tag = 'internal scratch']
  #allocation2 [shape = 'f32[8,128]{1,0:T(8,128)}', space=vmem, size = 0x1000, scoped, tag = 'scratch operand']
  #allocation3 [shape = 'f32[8,128]{1,0:T(8,128)}', space=vmem, size = 0x1000, scoped, tag = 'scratch operand']
  #allocation4 [shape = 'f32[8,8,512]{2,1,0:T(8,128)}', space=vmem, size = 0x20000, scoped, tag = 'scratch operand']
  #allocation5 [shape = 'bf16[8,8,128]{2,1,0:T(8,128)(2,1)}', space=vmem, size = 0x4000, scoped, tag = 'scratch operand']
  %s0 = inlined_call_operand.vmem [shape: bf16[8,8,128], index: 0, kind: input, shape index: {}]
  %s1 = inlined_call_operand.vmem [shape: f32[8,128], index: 1, kind: input, shape index: {}, may-alias: {1,2}]
  %s2 = inlined_call_operand.vmem [shape: f32[8,128], index: 2, kind: input, shape index: {}, may-alias: {1,2}]
  %s3 = inlined_call_operand.vmem [shape: bf16[128,512], index: 3, kind: input, shape index: {}]
  %s4 = inlined_call_operand.vmem [shape: bf16[128,512], index: 4, kind: input, shape index: {}]
  %s5 = inlined_call_operand.vmem [shape: f32[1,512], index: 5, kind: input, shape index: {}]
  %s6 = inlined_call_operand.vmem [shape: bf16[128,128], index: 6, kind: input, shape index: {}]
  %s7 = inlined_call_operand.vmem [shape: f32[1,128], index: 7, kind: input, shape index: {}]
  %s8 = inlined_call_operand.vmem [shape: f32[8,8,128], index: 8, kind: output, shape index: {0}]
  %s9 = inlined_call_operand.vmem [shape: f32[8,128], index: 9, kind: output, shape index: {1}]
  %s10 = inlined_call_operand.vmem [shape: f32[8,128], index: 10, kind: output, shape index: {2}]
  %11 = xla_tuple %s8, %s9, %s10
  %s12 = sld [smem:[#allocation0]]
  $region70: #{sequence_net_forward.1} parent=0
    _
  %s14 = ssub.s32 1, %s12
  %s15 = scalar_select 0, %s14, %s12
  // Predicated region
  $region2: #{sequence_net_forward.1} parent=0 // pred_check
    _
  $region3: #{sequence_net_forward.1} parent=0 // pred_check_branch
    %17 = sbr.rel (0) target = $region5
  $region4: #{sequence_net_forward.1} parent=0 // pred_region
    _
  $region5: #{sequence_net_forward.1} parent=0 // pred_fallthru
    _
  // Predicated region
  $region6: #{sequence_net_forward.1} parent=0 // pred_check
    _
  $region7: #{sequence_net_forward.1} parent=0 // pred_check_branch
    %19 = sbr.rel (0) target = $region9
  $region8: #{sequence_net_forward.1} parent=0 // pred_region
    _
  $region9: #{sequence_net_forward.1} parent=0 // pred_fallthru
    _
  // Predicated region
  $region10: #{sequence_net_forward.1} parent=0 // pred_check
    _
  $region11: #{sequence_net_forward.1} parent=0 // pred_check_branch
    %21 = sbr.rel (0) target = $region13
  $region12: #{sequence_net_forward.1} parent=0 // pred_region
    _
  $region13: #{sequence_net_forward.1} parent=0 // pred_fallthru
    _
  // Predicated region
  $region14: #{sequence_net_forward.1} parent=0 // pred_check
    _
  $region15: #{sequence_net_forward.1} parent=0 // pred_check_branch
    %23 = sbr.rel (0) target = $region17
  $region16: #{sequence_net_forward.1} parent=0 // pred_region
    _
  $region17: #{sequence_net_forward.1} parent=0 // pred_fallthru
    _
  // Predicated region
  $region18: #{sequence_net_forward.1} parent=0 // pred_check
    _
  $region19: #{sequence_net_forward.1} parent=0 // pred_check_branch
    %25 = sbr.rel (0) target = $region21
  $region20: #{sequence_net_forward.1} parent=0 // pred_region
    _
  $region21: #{sequence_net_forward.1} parent=0 // pred_fallthru
    _
  // Predicated region
  $region22: #{sequence_net_forward.1} parent=0 // pred_check
    _
  $region23: #{sequence_net_forward.1} parent=0 // pred_check_branch
    %27 = sbr.rel (0) target = $region25
  $region24: #{sequence_net_forward.1} parent=0 // pred_region
    _
  $region25: #{sequence_net_forward.1} parent=0 // pred_fallthru
    _
  // Predicated region
  $region26: #{sequence_net_forward.1} parent=0 // pred_check
    _
  $region27: #{sequence_net_forward.1} parent=0 // pred_check_branch
    %29 = sbr.rel (0) target = $region29
  $region28: #{sequence_net_forward.1} parent=0 // pred_region
    _
  $region29: #{sequence_net_forward.1} parent=0 // pred_fallthru
    _
  // Predicated region
  $region30: #{sequence_net_forward.1} parent=0 // pred_check
    _
  $region31: #{sequence_net_forward.1} parent=0 // pred_check_branch
    %31 = sbr.rel (0) target = $region33
  $region32: #{sequence_net_forward.1} parent=0 // pred_region
    _
  $region33: #{sequence_net_forward.1} parent=0 // pred_fallthru
    _
  %p33 = scmp.eq.s32.totalorder 0, 0
  // Predicated region
  $region34: #{sequence_net_forward.1} parent=0 // pred_check
    %p34 = pneg %p33
  $region35: #{sequence_net_forward.1} parent=0 // pred_check_branch
    %36 = sbr.rel (%p34) target = $region37
  $region36: #{sequence_net_forward.1} parent=0 // pred_region
    %v37 = vld [vmem:[%s1] sm:$0xff]
    %38 = vst [vmem:[#allocation2] sm:$0xff] %v37
    %v39 = vld [vmem:[%s2] sm:$0xff]
    %40 = vst [vmem:[#allocation3] sm:$0xff] %v39
  $region37: #{sequence_net_forward.1} parent=0 // pred_fallthru
    _
  %v41 = vld [vmem:[%s0] sm:$0xf]
  %v42 = vld [vmem:[%s0 + $0x4] sm:$0xf]
  %v43 = vld [vmem:[%s0 + $0x8] sm:$0xf]
  %v44 = vld [vmem:[%s0 + $0xc] sm:$0xf]
  %v45 = vld [vmem:[%s0 + $0x10] sm:$0xf]
  %v46 = vld [vmem:[%s0 + $0x14] sm:$0xf]
  %v47 = vld [vmem:[%s0 + $0x18] sm:$0xf]
  %v48 = vld [vmem:[%s0 + $0x1c] sm:$0xf]
  %v49 = vld [vmem:[%s3] sm:$0xff]
  %v50 = vld [vmem:[%s3 + $0x8] sm:$0xff]
  %v51 = vld [vmem:[%s3 + $0x10] sm:$0xff]
  %v52 = vld [vmem:[%s3 + $0x18] sm:$0xff]
  %v53 = vld [vmem:[%s3 + $0x20] sm:$0xff]
  %v54 = vld [vmem:[%s3 + $0x28] sm:$0xff]
  %v55 = vld [vmem:[%s3 + $0x30] sm:$0xff]
  %v56 = vld [vmem:[%s3 + $0x38] sm:$0xff]
  %v57 = vld [vmem:[%s3 + $0x40] sm:$0xff]
  %v58 = vld [vmem:[%s3 + $0x48] sm:$0xff]
  %v59 = vld [vmem:[%s3 + $0x50] sm:$0xff]
  %v60 = vld [vmem:[%s3 + $0x58] sm:$0xff]
  %v61 = vld [vmem:[%s3 + $0x60] sm:$0xff]
  %v62 = vld [vmem:[%s3 + $0x68] sm:$0xff]
  %v63 = vld [vmem:[%s3 + $0x70] sm:$0xff]
  %v64 = vld [vmem:[%s3 + $0x78] sm:$0xff]
  %v65 = vld [vmem:[%s3 + $0x80] sm:$0xff]
  %v66 = vld [vmem:[%s3 + $0x88] sm:$0xff]
  %v67 = vld [vmem:[%s3 + $0x90] sm:$0xff]
  %v68 = vld [vmem:[%s3 + $0x98] sm:$0xff]
  %v69 = vld [vmem:[%s3 + $0xa0] sm:$0xff]
  %v70 = vld [vmem:[%s3 + $0xa8] sm:$0xff]
  %v71 = vld [vmem:[%s3 + $0xb0] sm:$0xff]
  %v72 = vld [vmem:[%s3 + $0xb8] sm:$0xff]
  %v73 = vld [vmem:[%s3 + $0xc0] sm:$0xff]
  %v74 = vld [vmem:[%s3 + $0xc8] sm:$0xff]
  %v75 = vld [vmem:[%s3 + $0xd0] sm:$0xff]
  %v76 = vld [vmem:[%s3 + $0xd8] sm:$0xff]
  %v77 = vld [vmem:[%s3 + $0xe0] sm:$0xff]
  %v78 = vld [vmem:[%s3 + $0xe8] sm:$0xff]
  %v79 = vld [vmem:[%s3 + $0xf0] sm:$0xff]
  %v80 = vld [vmem:[%s3 + $0xf8] sm:$0xff]
  %v81 = vld [vmem:[%s5] sm:$0xf]
  %v83 = vlaneseq
  %v84 = vshrl.u32 %v83, 7
  %v85 = vsub.s32 0, %v84
  %v86 = vrot.slane %v81, %v85
  %v87 = vlaneseq
  %v88 = vshrl.u32 %v87, 7
  %v89 = vsub.s32 1, %v88
  %v90 = vrot.slane %v81, %v89
  %v91 = vlaneseq
  %v92 = vshrl.u32 %v91, 7
  %v93 = vsub.s32 2, %v92
  %v94 = vrot.slane %v81, %v93
  %v95 = vlaneseq
  %v96 = vshrl.u32 %v95, 7
  %v97 = vsub.s32 3, %v96
  %v98 = vrot.slane %v81, %v97
  %v111 = vunpack.c.l.b16 %v41
  %v112 = vunpack.c.l.b16 %v42
  %v113 = vunpack.c.l.b16 %v43
  %v114 = vunpack.c.l.b16 %v44
  %v115 = vunpack.c.l.b16 %v45
  %v116 = vunpack.c.l.b16 %v46
  %v117 = vunpack.c.l.b16 %v47
  %v118 = vunpack.c.l.b16 %v48
  %v119 = vpack.c.b16 %v112, %v111
  %v120 = vpack.c.b16 %v114, %v113
  %v121 = vpack.c.b16 %v116, %v115
  %v122 = vpack.c.b16 %v118, %v117
  %v159 = vunpack.c.l.b16 %v49
  %v160 = vunpack.c.h.b16 %v49
  %v161 = vunpack.c.l.b16 %v50
  %v162 = vunpack.c.h.b16 %v50
  %v163 = vunpack.c.l.b16 %v51
  %v164 = vunpack.c.h.b16 %v51
  %v165 = vunpack.c.l.b16 %v52
  %v166 = vunpack.c.h.b16 %v52
  %v167 = vunpack.c.l.b16 %v53
  %v168 = vunpack.c.h.b16 %v53
  %v169 = vunpack.c.l.b16 %v54
  %v170 = vunpack.c.h.b16 %v54
  %v171 = vunpack.c.l.b16 %v55
  %v172 = vunpack.c.h.b16 %v55
  %v173 = vunpack.c.l.b16 %v56
  %v174 = vunpack.c.h.b16 %v56
  %v175 = vunpack.c.l.b16 %v57
  %v176 = vunpack.c.h.b16 %v57
  %v177 = vunpack.c.l.b16 %v58
  %v178 = vunpack.c.h.b16 %v58
  %v179 = vunpack.c.l.b16 %v59
  %v180 = vunpack.c.h.b16 %v59
  %v181 = vunpack.c.l.b16 %v60
  %v182 = vunpack.c.h.b16 %v60
  %v183 = vunpack.c.l.b16 %v61
  %v184 = vunpack.c.h.b16 %v61
  %v185 = vunpack.c.l.b16 %v62
  %v186 = vunpack.c.h.b16 %v62
  %v187 = vunpack.c.l.b16 %v63
  %v188 = vunpack.c.h.b16 %v63
  %v189 = vunpack.c.l.b16 %v64
  %v190 = vunpack.c.h.b16 %v64
  %v191 = vunpack.c.l.b16 %v65
  %v192 = vunpack.c.h.b16 %v65
  %v193 = vunpack.c.l.b16 %v66
  %v194 = vunpack.c.h.b16 %v66
  %v195 = vunpack.c.l.b16 %v67
  %v196 = vunpack.c.h.b16 %v67
  %v197 = vunpack.c.l.b16 %v68
  %v198 = vunpack.c.h.b16 %v68
  %v199 = vunpack.c.l.b16 %v69
  %v200 = vunpack.c.h.b16 %v69
  %v201 = vunpack.c.l.b16 %v70
  %v202 = vunpack.c.h.b16 %v70
  %v203 = vunpack.c.l.b16 %v71
  %v204 = vunpack.c.h.b16 %v71
  %v205 = vunpack.c.l.b16 %v72
  %v206 = vunpack.c.h.b16 %v72
  %v207 = vunpack.c.l.b16 %v73
  %v208 = vunpack.c.h.b16 %v73
  %v209 = vunpack.c.l.b16 %v74
  %v210 = vunpack.c.h.b16 %v74
  %v211 = vunpack.c.l.b16 %v75
  %v212 = vunpack.c.h.b16 %v75
  %v213 = vunpack.c.l.b16 %v76
  %v214 = vunpack.c.h.b16 %v76
  %v215 = vunpack.c.l.b16 %v77
  %v216 = vunpack.c.h.b16 %v77
  %v217 = vunpack.c.l.b16 %v78
  %v218 = vunpack.c.h.b16 %v78
  %v219 = vunpack.c.l.b16 %v79
  %v220 = vunpack.c.h.b16 %v79
  %v221 = vunpack.c.l.b16 %v80
  %v222 = vunpack.c.h.b16 %v80
  %v223 = vpack.c.b16 %v163, %v159
  %v224 = vpack.c.b16 %v164, %v160
  %v225 = vpack.c.b16 %v165, %v161
  %v226 = vpack.c.b16 %v166, %v162
  %v227 = vpack.c.b16 %v171, %v167
  %v228 = vpack.c.b16 %v172, %v168
  %v229 = vpack.c.b16 %v173, %v169
  %v230 = vpack.c.b16 %v174, %v170
  %v231 = vpack.c.b16 %v179, %v175
  %v232 = vpack.c.b16 %v180, %v176
  %v233 = vpack.c.b16 %v181, %v177
  %v234 = vpack.c.b16 %v182, %v178
  %v235 = vpack.c.b16 %v187, %v183
  %v236 = vpack.c.b16 %v188, %v184
  %v237 = vpack.c.b16 %v189, %v185
  %v238 = vpack.c.b16 %v190, %v186
  %v239 = vpack.c.b16 %v195, %v191
  %v240 = vpack.c.b16 %v196, %v192
  %v241 = vpack.c.b16 %v197, %v193
  %v242 = vpack.c.b16 %v198, %v194
  %v243 = vpack.c.b16 %v203, %v199
  %v244 = vpack.c.b16 %v204, %v200
  %v245 = vpack.c.b16 %v205, %v201
  %v246 = vpack.c.b16 %v206, %v202
  %v247 = vpack.c.b16 %v211, %v207
  %v248 = vpack.c.b16 %v212, %v208
  %v249 = vpack.c.b16 %v213, %v209
  %v250 = vpack.c.b16 %v214, %v210
  %v251 = vpack.c.b16 %v219, %v215
  %v252 = vpack.c.b16 %v220, %v216
  %v253 = vpack.c.b16 %v221, %v217
  %v254 = vpack.c.b16 %v222, %v218
  %287 = vmatprep.subr.bf16.mxu0 %v252
  %288 = vmatpush1.bf16.msra.mxu0 %v251
  %289 = vmatprep.subr.bf16.mxu0 %v248
  %290 = vmatpush1.bf16.msra.mxu0 %v247
  %291 = vmatprep.subr.bf16.mxu0 %v244
  %292 = vmatpush1.bf16.msra.mxu0 %v243
  %293 = vmatprep.subr.bf16.mxu0 %v240
  %294 = vmatpush1.bf16.msra.mxu0 %v239
  %295 = vmatprep.subr.bf16.mxu0 %v236
  %296 = vmatpush1.bf16.msra.mxu0 %v235
  %297 = vmatprep.subr.bf16.mxu0 %v232
  %298 = vmatpush1.bf16.msra.mxu0 %v231
  %299 = vmatprep.subr.bf16.mxu0 %v228
  %300 = vmatpush1.bf16.msra.mxu0 %v227
  %301 = vmatprep.subr.bf16.mxu0 %v224
  %302 = vmatpush1.bf16.msra.mxu0 %v223
  %303 = vmatprep.subr.bf16.mxu0 0
  %304 = vmatpush2.bf16.msra.mxu0 0
  %305 = vmatprep.subr.bf16.mxu0 0
  %306 = vmatpush2.bf16.msra.mxu0 0
  %307 = vmatprep.subr.bf16.mxu0 0
  %308 = vmatpush2.bf16.msra.mxu0 0
  %309 = vmatprep.subr.bf16.mxu0 0
  %310 = vmatpush2.bf16.msra.mxu0 0
  %311 = vmatprep.subr.bf16.mxu0 0
  %312 = vmatpush2.bf16.msra.mxu0 0
  %313 = vmatprep.subr.bf16.mxu0 0
  %314 = vmatpush2.bf16.msra.mxu0 0
  %315 = vmatprep.subr.bf16.mxu0 0
  %316 = vmatpush2.bf16.msra.mxu0 0
  %317 = vmatprep.subr.bf16.mxu0 0
  %318 = vmatpush2.bf16.msra.mxu0 0
  %319 = vmatprep.mubr.bf16.mxu0 0
  %320 = vmatmul.mubr.bf16.gmra.mxu0 %v119
  %v321 = vpop.f32.mrf.mxu0
  %v322 = vadd.f32 %v86, %v321
  %v323 = vpop.f32.mrf.mxu0
  %v324 = vadd.f32 %v90, %v323
  %v325 = vpop.f32.mrf.mxu0
  %v326 = vadd.f32 %v86, %v325
  %v327 = vpop.f32.mrf.mxu0
  %v328 = vadd.f32 %v90, %v327
  %329 = vmatprep.mubr.bf16.mxu0 0
  %330 = vmatmul.mubr.bf16.gmra.mxu0 %v120
  %v331 = vpop.f32.mrf.mxu0
  %v332 = vadd.f32 %v86, %v331
  %v333 = vpop.f32.mrf.mxu0
  %v334 = vadd.f32 %v90, %v333
  %v335 = vpop.f32.mrf.mxu0
  %v336 = vadd.f32 %v86, %v335
  %v337 = vpop.f32.mrf.mxu0
  %v338 = vadd.f32 %v90, %v337
  %339 = vmatprep.mubr.bf16.mxu0 0
  %340 = vmatmul.mubr.bf16.gmra.mxu0 %v121
  %v341 = vpop.f32.mrf.mxu0
  %v342 = vadd.f32 %v86, %v341
  %v343 = vpop.f32.mrf.mxu0
  %v344 = vadd.f32 %v90, %v343
  %v345 = vpop.f32.mrf.mxu0
  %v346 = vadd.f32 %v86, %v345
  %v347 = vpop.f32.mrf.mxu0
  %v348 = vadd.f32 %v90, %v347
  %349 = vmatprep.mubr.bf16.mxu0 0
  %350 = vmatmul.mubr.bf16.gmra.mxu0 %v122
  %v351 = vpop.f32.mrf.mxu0
  %v352 = vadd.f32 %v86, %v351
  %v353 = vpop.f32.mrf.mxu0
  %v354 = vadd.f32 %v90, %v353
  %v355 = vpop.f32.mrf.mxu0
  %v356 = vadd.f32 %v86, %v355
  %v357 = vpop.f32.mrf.mxu0
  %v358 = vadd.f32 %v90, %v357
  %359 = vdwg.mxu0
  %360 = vmatprep.subr.bf16.mxu0 %v254
  %361 = vmatpush1.bf16.msra.mxu0 %v253
  %362 = vmatprep.subr.bf16.mxu0 %v250
  %363 = vmatpush1.bf16.msra.mxu0 %v249
  %364 = vmatprep.subr.bf16.mxu0 %v246
  %365 = vmatpush1.bf16.msra.mxu0 %v245
  %366 = vmatprep.subr.bf16.mxu0 %v242
  %367 = vmatpush1.bf16.msra.mxu0 %v241
  %368 = vmatprep.subr.bf16.mxu0 %v238
  %369 = vmatpush1.bf16.msra.mxu0 %v237
  %370 = vmatprep.subr.bf16.mxu0 %v234
  %371 = vmatpush1.bf16.msra.mxu0 %v233
  %372 = vmatprep.subr.bf16.mxu0 %v230
  %373 = vmatpush1.bf16.msra.mxu0 %v229
  %374 = vmatprep.subr.bf16.mxu0 %v226
  %375 = vmatpush1.bf16.msra.mxu0 %v225
  %376 = vmatprep.subr.bf16.mxu0 0
  %377 = vmatpush2.bf16.msra.mxu0 0
  %378 = vmatprep.subr.bf16.mxu0 0
  %379 = vmatpush2.bf16.msra.mxu0 0
  %380 = vmatprep.subr.bf16.mxu0 0
  %381 = vmatpush2.bf16.msra.mxu0 0
  %382 = vmatprep.subr.bf16.mxu0 0
  %383 = vmatpush2.bf16.msra.mxu0 0
  %384 = vmatprep.subr.bf16.mxu0 0
  %385 = vmatpush2.bf16.msra.mxu0 0
  %386 = vmatprep.subr.bf16.mxu0 0
  %387 = vmatpush2.bf16.msra.mxu0 0
  %388 = vmatprep.subr.bf16.mxu0 0
  %389 = vmatpush2.bf16.msra.mxu0 0
  %390 = vmatprep.subr.bf16.mxu0 0
  %391 = vmatpush2.bf16.msra.mxu0 0
  %392 = vmatprep.mubr.bf16.mxu0 0
  %393 = vmatmul.mubr.bf16.gmra.mxu0 %v119
  %v394 = vpop.f32.mrf.mxu0
  %v395 = vadd.f32 %v94, %v394
  %v396 = vpop.f32.mrf.mxu0
  %v397 = vadd.f32 %v98, %v396
  %v398 = vpop.f32.mrf.mxu0
  %v399 = vadd.f32 %v94, %v398
  %v400 = vpop.f32.mrf.mxu0
  %v401 = vadd.f32 %v98, %v400
  %402 = vmatprep.mubr.bf16.mxu0 0
  %403 = vmatmul.mubr.bf16.gmra.mxu0 %v120
  %v404 = vpop.f32.mrf.mxu0
  %v405 = vadd.f32 %v94, %v404
  %v406 = vpop.f32.mrf.mxu0
  %v407 = vadd.f32 %v98, %v406
  %v408 = vpop.f32.mrf.mxu0
  %v409 = vadd.f32 %v94, %v408
  %v410 = vpop.f32.mrf.mxu0
  %v411 = vadd.f32 %v98, %v410
  %412 = vmatprep.mubr.bf16.mxu0 0
  %413 = vmatmul.mubr.bf16.gmra.mxu0 %v121
  %v414 = vpop.f32.mrf.mxu0
  %v415 = vadd.f32 %v94, %v414
  %v416 = vpop.f32.mrf.mxu0
  %v417 = vadd.f32 %v98, %v416
  %v418 = vpop.f32.mrf.mxu0
  %v419 = vadd.f32 %v94, %v418
  %v420 = vpop.f32.mrf.mxu0
  %v421 = vadd.f32 %v98, %v420
  %422 = vmatprep.mubr.bf16.mxu0 0
  %423 = vmatmul.mubr.bf16.gmra.mxu0 %v122
  %v424 = vpop.f32.mrf.mxu0
  %v425 = vadd.f32 %v94, %v424
  %v426 = vpop.f32.mrf.mxu0
  %v427 = vadd.f32 %v98, %v426
  %v428 = vpop.f32.mrf.mxu0
  %v429 = vadd.f32 %v94, %v428
  %v430 = vpop.f32.mrf.mxu0
  %v431 = vadd.f32 %v98, %v430
  %432 = vdwg.mxu0
  %433 = vst [vmem:[#allocation4] sm:$0xff] %v322
  %434 = vst [vmem:[#allocation4 + $0x8] sm:$0xff] %v324
  %435 = vst [vmem:[#allocation4 + $0x10] sm:$0xff] %v395
  %436 = vst [vmem:[#allocation4 + $0x18] sm:$0xff] %v397
  %437 = vst [vmem:[#allocation4 + $0x20] sm:$0xff] %v326
  %438 = vst [vmem:[#allocation4 + $0x28] sm:$0xff] %v328
  %439 = vst [vmem:[#allocation4 + $0x30] sm:$0xff] %v399
  %440 = vst [vmem:[#allocation4 + $0x38] sm:$0xff] %v401
  %441 = vst [vmem:[#allocation4 + $0x40] sm:$0xff] %v332
  %442 = vst [vmem:[#allocation4 + $0x48] sm:$0xff] %v334
  %443 = vst [vmem:[#allocation4 + $0x50] sm:$0xff] %v405
  %444 = vst [vmem:[#allocation4 + $0x58] sm:$0xff] %v407
  %445 = vst [vmem:[#allocation4 + $0x60] sm:$0xff] %v336
  %446 = vst [vmem:[#allocation4 + $0x68] sm:$0xff] %v338
  %447 = vst [vmem:[#allocation4 + $0x70] sm:$0xff] %v409
  %448 = vst [vmem:[#allocation4 + $0x78] sm:$0xff] %v411
  %449 = vst [vmem:[#allocation4 + $0x80] sm:$0xff] %v342
  %450 = vst [vmem:[#allocation4 + $0x88] sm:$0xff] %v344
  %451 = vst [vmem:[#allocation4 + $0x90] sm:$0xff] %v415
  %452 = vst [vmem:[#allocation4 + $0x98] sm:$0xff] %v417
  %453 = vst [vmem:[#allocation4 + $0xa0] sm:$0xff] %v346
  %454 = vst [vmem:[#allocation4 + $0xa8] sm:$0xff] %v348
  %455 = vst [vmem:[#allocation4 + $0xb0] sm:$0xff] %v419
  %456 = vst [vmem:[#allocation4 + $0xb8] sm:$0xff] %v421
  %457 = vst [vmem:[#allocation4 + $0xc0] sm:$0xff] %v352
  %458 = vst [vmem:[#allocation4 + $0xc8] sm:$0xff] %v354
  %459 = vst [vmem:[#allocation4 + $0xd0] sm:$0xff] %v425
  %460 = vst [vmem:[#allocation4 + $0xd8] sm:$0xff] %v427
  %461 = vst [vmem:[#allocation4 + $0xe0] sm:$0xff] %v356
  %462 = vst [vmem:[#allocation4 + $0xe8] sm:$0xff] %v358
  %463 = vst [vmem:[#allocation4 + $0xf0] sm:$0xff] %v429
  %464 = vst [vmem:[#allocation4 + $0xf8] sm:$0xff] %v431
  %v465 = vld [vmem:[%s4] sm:$0xff]
  %v466 = vld [vmem:[%s4 + $0x8] sm:$0xff]
  %v467 = vld [vmem:[%s4 + $0x10] sm:$0xff]
  %v468 = vld [vmem:[%s4 + $0x18] sm:$0xff]
  %v469 = vld [vmem:[%s4 + $0x20] sm:$0xff]
  %v470 = vld [vmem:[%s4 + $0x28] sm:$0xff]
  %v471 = vld [vmem:[%s4 + $0x30] sm:$0xff]
  %v472 = vld [vmem:[%s4 + $0x38] sm:$0xff]
  %v473 = vld [vmem:[%s4 + $0x40] sm:$0xff]
  %v474 = vld [vmem:[%s4 + $0x48] sm:$0xff]
  %v475 = vld [vmem:[%s4 + $0x50] sm:$0xff]
  %v476 = vld [vmem:[%s4 + $0x58] sm:$0xff]
  %v477 = vld [vmem:[%s4 + $0x60] sm:$0xff]
  %v478 = vld [vmem:[%s4 + $0x68] sm:$0xff]
  %v479 = vld [vmem:[%s4 + $0x70] sm:$0xff]
  %v480 = vld [vmem:[%s4 + $0x78] sm:$0xff]
  %v481 = vld [vmem:[%s4 + $0x80] sm:$0xff]
  %v482 = vld [vmem:[%s4 + $0x88] sm:$0xff]
  %v483 = vld [vmem:[%s4 + $0x90] sm:$0xff]
  %v484 = vld [vmem:[%s4 + $0x98] sm:$0xff]
  %v485 = vld [vmem:[%s4 + $0xa0] sm:$0xff]
  %v486 = vld [vmem:[%s4 + $0xa8] sm:$0xff]
  %v487 = vld [vmem:[%s4 + $0xb0] sm:$0xff]
  %v488 = vld [vmem:[%s4 + $0xb8] sm:$0xff]
  %v489 = vld [vmem:[%s4 + $0xc0] sm:$0xff]
  %v490 = vld [vmem:[%s4 + $0xc8] sm:$0xff]
  %v491 = vld [vmem:[%s4 + $0xd0] sm:$0xff]
  %v492 = vld [vmem:[%s4 + $0xd8] sm:$0xff]
  %v493 = vld [vmem:[%s4 + $0xe0] sm:$0xff]
  %v494 = vld [vmem:[%s4 + $0xe8] sm:$0xff]
  %v495 = vld [vmem:[%s4 + $0xf0] sm:$0xff]
  %v496 = vld [vmem:[%s4 + $0xf8] sm:$0xff]
  %v497 = vld [vmem:[#allocation2] sm:$0xff]
  %v498 = vld [vmem:[#allocation3] sm:$0xff]
  %v499 = vld [vmem:[#allocation4] sm:$0xff]
  %v500 = vld [vmem:[#allocation4 + $0x8] sm:$0xff]
  %v501 = vld [vmem:[#allocation4 + $0x10] sm:$0xff]
  %v502 = vld [vmem:[#allocation4 + $0x18] sm:$0xff]
  %v503 = vpack.c.bf16 %v497, %v497
  %v536 = vunpack.c.l.b16 %v465
  %v537 = vunpack.c.h.b16 %v465
  %v538 = vunpack.c.l.b16 %v466
  %v539 = vunpack.c.h.b16 %v466
  %v540 = vunpack.c.l.b16 %v467
  %v541 = vunpack.c.h.b16 %v467
  %v542 = vunpack.c.l.b16 %v468
  %v543 = vunpack.c.h.b16 %v468
  %v544 = vunpack.c.l.b16 %v469
  %v545 = vunpack.c.h.b16 %v469
  %v546 = vunpack.c.l.b16 %v470
  %v547 = vunpack.c.h.b16 %v470
  %v548 = vunpack.c.l.b16 %v471
  %v549 = vunpack.c.h.b16 %v471
  %v550 = vunpack.c.l.b16 %v472
  %v551 = vunpack.c.h.b16 %v472
  %v552 = vunpack.c.l.b16 %v473
  %v553 = vunpack.c.h.b16 %v473
  %v554 = vunpack.c.l.b16 %v474
  %v555 = vunpack.c.h.b16 %v474
  %v556 = vunpack.c.l.b16 %v475
  %v557 = vunpack.c.h.b16 %v475
  %v558 = vunpack.c.l.b16 %v476
  %v559 = vunpack.c.h.b16 %v476
  %v560 = vunpack.c.l.b16 %v477
  %v561 = vunpack.c.h.b16 %v477
  %v562 = vunpack.c.l.b16 %v478
  %v563 = vunpack.c.h.b16 %v478
  %v564 = vunpack.c.l.b16 %v479
  %v565 = vunpack.c.h.b16 %v479
  %v566 = vunpack.c.l.b16 %v480
  %v567 = vunpack.c.h.b16 %v480
  %v568 = vunpack.c.l.b16 %v481
  %v569 = vunpack.c.h.b16 %v481
  %v570 = vunpack.c.l.b16 %v482
  %v571 = vunpack.c.h.b16 %v482
  %v572 = vunpack.c.l.b16 %v483
  %v573 = vunpack.c.h.b16 %v483
  %v574 = vunpack.c.l.b16 %v484
  %v575 = vunpack.c.h.b16 %v484
  %v576 = vunpack.c.l.b16 %v485
  %v577 = vunpack.c.h.b16 %v485
  %v578 = vunpack.c.l.b16 %v486
  %v579 = vunpack.c.h.b16 %v486
  %v580 = vunpack.c.l.b16 %v487
  %v581 = vunpack.c.h.b16 %v487
  %v582 = vunpack.c.l.b16 %v488
  %v583 = vunpack.c.h.b16 %v488
  %v584 = vunpack.c.l.b16 %v489
  %v585 = vunpack.c.h.b16 %v489
  %v586 = vunpack.c.l.b16 %v490
  %v587 = vunpack.c.h.b16 %v490
  %v588 = vunpack.c.l.b16 %v491
  %v589 = vunpack.c.h.b16 %v491
  %v590 = vunpack.c.l.b16 %v492
  %v591 = vunpack.c.h.b16 %v492
  %v592 = vunpack.c.l.b16 %v493
  %v593 = vunpack.c.h.b16 %v493
  %v594 = vunpack.c.l.b16 %v494
  %v595 = vunpack.c.h.b16 %v494
  %v596 = vunpack.c.l.b16 %v495
  %v597 = vunpack.c.h.b16 %v495
  %v598 = vunpack.c.l.b16 %v496
  %v599 = vunpack.c.h.b16 %v496
  %v600 = vpack.c.b16 %v540, %v536
  %v601 = vpack.c.b16 %v541, %v537
  %v602 = vpack.c.b16 %v542, %v538
  %v603 = vpack.c.b16 %v543, %v539
  %v604 = vpack.c.b16 %v548, %v544
  %v605 = vpack.c.b16 %v549, %v545
  %v606 = vpack.c.b16 %v550, %v546
  %v607 = vpack.c.b16 %v551, %v547
  %v608 = vpack.c.b16 %v556, %v552
  %v609 = vpack.c.b16 %v557, %v553
  %v610 = vpack.c.b16 %v558, %v554
  %v611 = vpack.c.b16 %v559, %v555
  %v612 = vpack.c.b16 %v564, %v560
  %v613 = vpack.c.b16 %v565, %v561
  %v614 = vpack.c.b16 %v566, %v562
  %v615 = vpack.c.b16 %v567, %v563
  %v616 = vpack.c.b16 %v572, %v568
  %v617 = vpack.c.b16 %v573, %v569
  %v618 = vpack.c.b16 %v574, %v570
  %v619 = vpack.c.b16 %v575, %v571
  %v620 = vpack.c.b16 %v580, %v576
  %v621 = vpack.c.b16 %v581, %v577
  %v622 = vpack.c.b16 %v582, %v578
  %v623 = vpack.c.b16 %v583, %v579
  %v624 = vpack.c.b16 %v588, %v584
  %v625 = vpack.c.b16 %v589, %v585
  %v626 = vpack.c.b16 %v590, %v586
  %v627 = vpack.c.b16 %v591, %v587
  %v628 = vpack.c.b16 %v596, %v592
  %v629 = vpack.c.b16 %v597, %v593
  %v630 = vpack.c.b16 %v598, %v594
  %v631 = vpack.c.b16 %v599, %v595
  %664 = vmatprep.subr.bf16.mxu0 %v629
  %665 = vmatpush1.bf16.msra.mxu0 %v628
  %666 = vmatprep.subr.bf16.mxu0 %v625
  %667 = vmatpush1.bf16.msra.mxu0 %v624
  %668 = vmatprep.subr.bf16.mxu0 %v621
  %669 = vmatpush1.bf16.msra.mxu0 %v620
  %670 = vmatprep.subr.bf16.mxu0 %v617
  %671 = vmatpush1.bf16.msra.mxu0 %v616
  %672 = vmatprep.subr.bf16.mxu0 %v613
  %673 = vmatpush1.bf16.msra.mxu0 %v612
  %674 = vmatprep.subr.bf16.mxu0 %v609
  %675 = vmatpush1.bf16.msra.mxu0 %v608
  %676 = vmatprep.subr.bf16.mxu0 %v605
  %677 = vmatpush1.bf16.msra.mxu0 %v604
  %678 = vmatprep.subr.bf16.mxu0 %v601
  %679 = vmatpush1.bf16.msra.mxu0 %v600
  %680 = vmatprep.subr.bf16.mxu0 0
  %681 = vmatpush2.bf16.msra.mxu0 0
  %682 = vmatprep.subr.bf16.mxu0 0
  %683 = vmatpush2.bf16.msra.mxu0 0
  %684 = vmatprep.subr.bf16.mxu0 0
  %685 = vmatpush2.bf16.msra.mxu0 0
  %686 = vmatprep.subr.bf16.mxu0 0
  %687 = vmatpush2.bf16.msra.mxu0 0
  %688 = vmatprep.subr.bf16.mxu0 0
  %689 = vmatpush2.bf16.msra.mxu0 0
  %690 = vmatprep.subr.bf16.mxu0 0
  %691 = vmatpush2.bf16.msra.mxu0 0
  %692 = vmatprep.subr.bf16.mxu0 0
  %693 = vmatpush2.bf16.msra.mxu0 0
  %694 = vmatprep.subr.bf16.mxu0 0
  %695 = vmatpush2.bf16.msra.mxu0 0
  %696 = vmatprep.mubr.bf16.mxu0 0
  %697 = vmatmul.mubr.bf16.gmra.mxu0 %v503
  %v698 = vpop.f32.mrf.mxu0
  %v699 = vadd.f32 0.0, %v698
  %v700 = vpop.f32.mrf.mxu0
  %v701 = vadd.f32 0.0, %v700
  %v702 = vpop.f32.mrf.mxu0
  %v703 = vpop.f32.mrf.mxu0
  %704 = vdwg.mxu0
  %705 = vmatprep.subr.bf16.mxu0 %v631
  %706 = vmatpush1.bf16.msra.mxu0 %v630
  %707 = vmatprep.subr.bf16.mxu0 %v627
  %708 = vmatpush1.bf16.msra.mxu0 %v626
  %709 = vmatprep.subr.bf16.mxu0 %v623
  %710 = vmatpush1.bf16.msra.mxu0 %v622
  %711 = vmatprep.subr.bf16.mxu0 %v619
  %712 = vmatpush1.bf16.msra.mxu0 %v618
  %713 = vmatprep.subr.bf16.mxu0 %v615
  %714 = vmatpush1.bf16.msra.mxu0 %v614
  %715 = vmatprep.subr.bf16.mxu0 %v611
  %716 = vmatpush1.bf16.msra.mxu0 %v610
  %717 = vmatprep.subr.bf16.mxu0 %v607
  %718 = vmatpush1.bf16.msra.mxu0 %v606
  %719 = vmatprep.subr.bf16.mxu0 %v603
  %720 = vmatpush1.bf16.msra.mxu0 %v602
  %721 = vmatprep.subr.bf16.mxu0 0
  %722 = vmatpush2.bf16.msra.mxu0 0
  %723 = vmatprep.subr.bf16.mxu0 0
  %724 = vmatpush2.bf16.msra.mxu0 0
  %725 = vmatprep.subr.bf16.mxu0 0
  %726 = vmatpush2.bf16.msra.mxu0 0
  %727 = vmatprep.subr.bf16.mxu0 0
  %728 = vmatpush2.bf16.msra.mxu0 0
  %729 = vmatprep.subr.bf16.mxu0 0
  %730 = vmatpush2.bf16.msra.mxu0 0
  %731 = vmatprep.subr.bf16.mxu0 0
  %732 = vmatpush2.bf16.msra.mxu0 0
  %733 = vmatprep.subr.bf16.mxu0 0
  %734 = vmatpush2.bf16.msra.mxu0 0
  %735 = vmatprep.subr.bf16.mxu0 0
  %736 = vmatpush2.bf16.msra.mxu0 0
  %737 = vmatprep.mubr.bf16.mxu0 0
  %738 = vmatmul.mubr.bf16.gmra.mxu0 %v503
  %v739 = vpop.f32.mrf.mxu0
  %v740 = vadd.f32 0.0, %v739
  %v741 = vpop.f32.mrf.mxu0
  %v742 = vadd.f32 0.0, %v741
  %v743 = vpop.f32.mrf.mxu0
  %v744 = vpop.f32.mrf.mxu0
  %745 = vdwg.mxu0
  %v746 = vadd.f32 %v499, %v699
  %v747 = vadd.f32 %v500, %v701
  %v748 = vadd.f32 %v501, %v740
  %v749 = vadd.f32 %v502, %v742
  %v750 = vmul.f32 %v746, 0.5
  %v751 = vtanh.pop %v750
  %v752 = vmul.f32 %v751, 0.5
  %v753 = vadd.f32 %v752, 0.5
  %v754 = vmul.f32 %v747, 0.5
  %v755 = vtanh.pop %v754
  %v756 = vmul.f32 %v755, 0.5
  %v757 = vadd.f32 %v756, 0.5
  %v758 = vtanh.pop %v748
  %v759 = vmul.f32 %v749, 0.5
  %v760 = vtanh.pop %v759
  %v761 = vmul.f32 %v760, 0.5
  %v762 = vadd.f32 %v761, 0.5
  %v763 = vmul.f32 %v757, %v498
  %v764 = vmul.f32 %v753, %v758
  %v765 = vadd.f32 %v763, %v764
  %v766 = vtanh.pop %v765
  %v767 = vmul.f32 %v762, %v766
  %v768 = vpack.c.bf16 %v767, %v767
  %769 = vst [vmem:[#allocation5] sm:$0xf] %v768
  %s770 = scalar_lea.vmem [#allocation4], 32
  %v771 = vld [vmem:[%s770] sm:$0xff]
  %v772 = vld [vmem:[%s770 + $0x8] sm:$0xff]
  %v773 = vld [vmem:[%s770 + $0x10] sm:$0xff]
  %v774 = vld [vmem:[%s770 + $0x18] sm:$0xff]
  %775 = vmatprep.subr.bf16.mxu0 %v629
  %776 = vmatpush1.bf16.msra.mxu0 %v628
  %777 = vmatprep.subr.bf16.mxu0 %v625
  %778 = vmatpush1.bf16.msra.mxu0 %v624
  %779 = vmatprep.subr.bf16.mxu0 %v621
  %780 = vmatpush1.bf16.msra.mxu0 %v620
  %781 = vmatprep.subr.bf16.mxu0 %v617
  %782 = vmatpush1.bf16.msra.mxu0 %v616
  %783 = vmatprep.subr.bf16.mxu0 %v613
  %784 = vmatpush1.bf16.msra.mxu0 %v612
  %785 = vmatprep.subr.bf16.mxu0 %v609
  %786 = vmatpush1.bf16.msra.mxu0 %v608
  %787 = vmatprep.subr.bf16.mxu0 %v605
  %788 = vmatpush1.bf16.msra.mxu0 %v604
  %789 = vmatprep.subr.bf16.mxu0 %v601
  %790 = vmatpush1.bf16.msra.mxu0 %v600
  %791 = vmatprep.subr.bf16.mxu0 0
  %792 = vmatpush2.bf16.msra.mxu0 0
  %793 = vmatprep.subr.bf16.mxu0 0
  %794 = vmatpush2.bf16.msra.mxu0 0
  %795 = vmatprep.subr.bf16.mxu0 0
  %796 = vmatpush2.bf16.msra.mxu0 0
  %797 = vmatprep.subr.bf16.mxu0 0
  %798 = vmatpush2.bf16.msra.mxu0 0
  %799 = vmatprep.subr.bf16.mxu0 0
  %800 = vmatpush2.bf16.msra.mxu0 0
  %801 = vmatprep.subr.bf16.mxu0 0
  %802 = vmatpush2.bf16.msra.mxu0 0
  %803 = vmatprep.subr.bf16.mxu0 0
  %804 = vmatpush2.bf16.msra.mxu0 0
  %805 = vmatprep.subr.bf16.mxu0 0
  %806 = vmatpush2.bf16.msra.mxu0 0
  %807 = vmatprep.mubr.bf16.mxu0 0
  %808 = vmatmul.mubr.bf16.gmra.mxu0 %v768
  %v809 = vpop.f32.mrf.mxu0
  %v810 = vadd.f32 0.0, %v809
  %v811 = vpop.f32.mrf.mxu0
  %v812 = vadd.f32 0.0, %v811
  %v813 = vpop.f32.mrf.mxu0
  %v814 = vpop.f32.mrf.mxu0
  %815 = vdwg.mxu0
  %816 = vmatprep.subr.bf16.mxu0 %v631
  %817 = vmatpush1.bf16.msra.mxu0 %v630
  %818 = vmatprep.subr.bf16.mxu0 %v627
  %819 = vmatpush1.bf16.msra.mxu0 %v626
  %820 = vmatprep.subr.bf16.mxu0 %v623
  %821 = vmatpush1.bf16.msra.mxu0 %v622
  %822 = vmatprep.subr.bf16.mxu0 %v619
  %823 = vmatpush1.bf16.msra.mxu0 %v618
  %824 = vmatprep.subr.bf16.mxu0 %v615
  %825 = vmatpush1.bf16.msra.mxu0 %v614
  %826 = vmatprep.subr.bf16.mxu0 %v611
  %827 = vmatpush1.bf16.msra.mxu0 %v610
  %828 = vmatprep.subr.bf16.mxu0 %v607
  %829 = vmatpush1.bf16.msra.mxu0 %v606
  %830 = vmatprep.subr.bf16.mxu0 %v603
  %831 = vmatpush1.bf16.msra.mxu0 %v602
  %832 = vmatprep.subr.bf16.mxu0 0
  %833 = vmatpush2.bf16.msra.mxu0 0
  %834 = vmatprep.subr.bf16.mxu0 0
  %835 = vmatpush2.bf16.msra.mxu0 0
  %836 = vmatprep.subr.bf16.mxu0 0
  %837 = vmatpush2.bf16.msra.mxu0 0
  %838 = vmatprep.subr.bf16.mxu0 0
  %839 = vmatpush2.bf16.msra.mxu0 0
  %840 = vmatprep.subr.bf16.mxu0 0
  %841 = vmatpush2.bf16.msra.mxu0 0
  %842 = vmatprep.subr.bf16.mxu0 0
  %843 = vmatpush2.bf16.msra.mxu0 0
  %844 = vmatprep.subr.bf16.mxu0 0
  %845 = vmatpush2.bf16.msra.mxu0 0
  %846 = vmatprep.subr.bf16.mxu0 0
  %847 = vmatpush2.bf16.msra.mxu0 0
  %848 = vmatprep.mubr.bf16.mxu0 0
  %849 = vmatmul.mubr.bf16.gmra.mxu0 %v768
  %v850 = vpop.f32.mrf.mxu0
  %v851 = vadd.f32 0.0, %v850
  %v852 = vpop.f32.mrf.mxu0
  %v853 = vadd.f32 0.0, %v852
  %v854 = vpop.f32.mrf.mxu0
  %v855 = vpop.f32.mrf.mxu0
  %856 = vdwg.mxu0
  %v857 = vadd.f32 %v771, %v810
  %v858 = vadd.f32 %v772, %v812
  %v859 = vadd.f32 %v773, %v851
  %v860 = vadd.f32 %v774, %v853
  %v861 = vmul.f32 %v857, 0.5
  %v862 = vtanh.pop %v861
  %v863 = vmul.f32 %v862, 0.5
  %v864 = vadd.f32 %v863, 0.5
  %v865 = vmul.f32 %v858, 0.5
  %v866 = vtanh.pop %v865
  %v867 = vmul.f32 %v866, 0.5
  %v868 = vadd.f32 %v867, 0.5
  %v869 = vtanh.pop %v859
  %v870 = vmul.f32 %v860, 0.5
  %v871 = vtanh.pop %v870
  %v872 = vmul.f32 %v871, 0.5
  %v873 = vadd.f32 %v872, 0.5
  %v874 = vmul.f32 %v868, %v765
  %v875 = vmul.f32 %v864, %v869
  %v876 = vadd.f32 %v874, %v875
  %v877 = vtanh.pop %v876
  %v878 = vmul.f32 %v873, %v877
  %v879 = vpack.c.bf16 %v878, %v878
  %s880 = scalar_lea.vmem [#allocation5], 4
  %881 = vst [vmem:[%s880] sm:$0xf] %v879
  %s882 = scalar_lea.vmem [#allocation4], 64
  %v883 = vld [vmem:[%s882] sm:$0xff]
  %v884 = vld [vmem:[%s882 + $0x8] sm:$0xff]
  %v885 = vld [vmem:[%s882 + $0x10] sm:$0xff]
  %v886 = vld [vmem:[%s882 + $0x18] sm:$0xff]
  %887 = vmatprep.subr.bf16.mxu0 %v629
  %888 = vmatpush1.bf16.msra.mxu0 %v628
  %889 = vmatprep.subr.bf16.mxu0 %v625
  %890 = vmatpush1.bf16.msra.mxu0 %v624
  %891 = vmatprep.subr.bf16.mxu0 %v621
  %892 = vmatpush1.bf16.msra.mxu0 %v620
  %893 = vmatprep.subr.bf16.mxu0 %v617
  %894 = vmatpush1.bf16.msra.mxu0 %v616
  %895 = vmatprep.subr.bf16.mxu0 %v613
  %896 = vmatpush1.bf16.msra.mxu0 %v612
  %897 = vmatprep.subr.bf16.mxu0 %v609
  %898 = vmatpush1.bf16.msra.mxu0 %v608
  %899 = vmatprep.subr.bf16.mxu0 %v605
  %900 = vmatpush1.bf16.msra.mxu0 %v604
  %901 = vmatprep.subr.bf16.mxu0 %v601
  %902 = vmatpush1.bf16.msra.mxu0 %v600
  %903 = vmatprep.subr.bf16.mxu0 0
  %904 = vmatpush2.bf16.msra.mxu0 0
  %905 = vmatprep.subr.bf16.mxu0 0
  %906 = vmatpush2.bf16.msra.mxu0 0
  %907 = vmatprep.subr.bf16.mxu0 0
  %908 = vmatpush2.bf16.msra.mxu0 0
  %909 = vmatprep.subr.bf16.mxu0 0
  %910 = vmatpush2.bf16.msra.mxu0 0
  %911 = vmatprep.subr.bf16.mxu0 0
  %912 = vmatpush2.bf16.msra.mxu0 0
  %913 = vmatprep.subr.bf16.mxu0 0
  %914 = vmatpush2.bf16.msra.mxu0 0
  %915 = vmatprep.subr.bf16.mxu0 0
  %916 = vmatpush2.bf16.msra.mxu0 0
  %917 = vmatprep.subr.bf16.mxu0 0
  %918 = vmatpush2.bf16.msra.mxu0 0
  %919 = vmatprep.mubr.bf16.mxu0 0
  %920 = vmatmul.mubr.bf16.gmra.mxu0 %v879
  %v921 = vpop.f32.mrf.mxu0
  %v922 = vadd.f32 0.0, %v921
  %v923 = vpop.f32.mrf.mxu0
  %v924 = vadd.f32 0.0, %v923
  %v925 = vpop.f32.mrf.mxu0
  %v926 = vpop.f32.mrf.mxu0
  %927 = vdwg.mxu0
  %928 = vmatprep.subr.bf16.mxu0 %v631
  %929 = vmatpush1.bf16.msra.mxu0 %v630
  %930 = vmatprep.subr.bf16.mxu0 %v627
  %931 = vmatpush1.bf16.msra.mxu0 %v626
  %932 = vmatprep.subr.bf16.mxu0 %v623
  %933 = vmatpush1.bf16.msra.mxu0 %v622
  %934 = vmatprep.subr.bf16.mxu0 %v619
  %935 = vmatpush1.bf16.msra.mxu0 %v618
  %936 = vmatprep.subr.bf16.mxu0 %v615
  %937 = vmatpush1.bf16.msra.mxu0 %v614
  %938 = vmatprep.subr.bf16.mxu0 %v611
  %939 = vmatpush1.bf16.msra.mxu0 %v610
  %940 = vmatprep.subr.bf16.mxu0 %v607
  %941 = vmatpush1.bf16.msra.mxu0 %v606
  %942 = vmatprep.subr.bf16.mxu0 %v603
  %943 = vmatpush1.bf16.msra.mxu0 %v602
  %944 = vmatprep.subr.bf16.mxu0 0
  %945 = vmatpush2.bf16.msra.mxu0 0
  %946 = vmatprep.subr.bf16.mxu0 0
  %947 = vmatpush2.bf16.msra.mxu0 0
  %948 = vmatprep.subr.bf16.mxu0 0
  %949 = vmatpush2.bf16.msra.mxu0 0
  %950 = vmatprep.subr.bf16.mxu0 0
  %951 = vmatpush2.bf16.msra.mxu0 0
  %952 = vmatprep.subr.bf16.mxu0 0
  %953 = vmatpush2.bf16.msra.mxu0 0
  %954 = vmatprep.subr.bf16.mxu0 0
  %955 = vmatpush2.bf16.msra.mxu0 0
  %956 = vmatprep.subr.bf16.mxu0 0
  %957 = vmatpush2.bf16.msra.mxu0 0
  %958 = vmatprep.subr.bf16.mxu0 0
  %959 = vmatpush2.bf16.msra.mxu0 0
  %960 = vmatprep.mubr.bf16.mxu0 0
  %961 = vmatmul.mubr.bf16.gmra.mxu0 %v879
  %v962 = vpop.f32.mrf.mxu0
  %v963 = vadd.f32 0.0, %v962
  %v964 = vpop.f32.mrf.mxu0
  %v965 = vadd.f32 0.0, %v964
  %v966 = vpop.f32.mrf.mxu0
  %v967 = vpop.f32.mrf.mxu0
  %968 = vdwg.mxu0
  %v969 = vadd.f32 %v883, %v922
  %v970 = vadd.f32 %v884, %v924
  %v971 = vadd.f32 %v885, %v963
  %v972 = vadd.f32 %v886, %v965
  %v973 = vmul.f32 %v969, 0.5
  %v974 = vtanh.pop %v973
  %v975 = vmul.f32 %v974, 0.5
  %v976 = vadd.f32 %v975, 0.5
  %v977 = vmul.f32 %v970, 0.5
  %v978 = vtanh.pop %v977
  %v979 = vmul.f32 %v978, 0.5
  %v980 = vadd.f32 %v979, 0.5
  %v981 = vtanh.pop %v971
  %v982 = vmul.f32 %v972, 0.5
  %v983 = vtanh.pop %v982
  %v984 = vmul.f32 %v983, 0.5
  %v985 = vadd.f32 %v984, 0.5
  %v986 = vmul.f32 %v980, %v876
  %v987 = vmul.f32 %v976, %v981
  %v988 = vadd.f32 %v986, %v987
  %v989 = vtanh.pop %v988
  %v990 = vmul.f32 %v985, %v989
  %v991 = vpack.c.bf16 %v990, %v990
  %s992 = scalar_lea.vmem [#allocation5], 8
  %993 = vst [vmem:[%s992] sm:$0xf] %v991
  %s994 = scalar_lea.vmem [#allocation4], 96
  %v995 = vld [vmem:[%s994] sm:$0xff]
  %v996 = vld [vmem:[%s994 + $0x8] sm:$0xff]
  %v997 = vld [vmem:[%s994 + $0x10] sm:$0xff]
  %v998 = vld [vmem:[%s994 + $0x18] sm:$0xff]
  %999 = vmatprep.subr.bf16.mxu0 %v629
  %1000 = vmatpush1.bf16.msra.mxu0 %v628
  %1001 = vmatprep.subr.bf16.mxu0 %v625
  %1002 = vmatpush1.bf16.msra.mxu0 %v624
  %1003 = vmatprep.subr.bf16.mxu0 %v621
  %1004 = vmatpush1.bf16.msra.mxu0 %v620
  %1005 = vmatprep.subr.bf16.mxu0 %v617
  %1006 = vmatpush1.bf16.msra.mxu0 %v616
  %1007 = vmatprep.subr.bf16.mxu0 %v613
  %1008 = vmatpush1.bf16.msra.mxu0 %v612
  %1009 = vmatprep.subr.bf16.mxu0 %v609
  %1010 = vmatpush1.bf16.msra.mxu0 %v608
  %1011 = vmatprep.subr.bf16.mxu0 %v605
  %1012 = vmatpush1.bf16.msra.mxu0 %v604
  %1013 = vmatprep.subr.bf16.mxu0 %v601
  %1014 = vmatpush1.bf16.msra.mxu0 %v600
  %1015 = vmatprep.subr.bf16.mxu0 0
  %1016 = vmatpush2.bf16.msra.mxu0 0
  %1017 = vmatprep.subr.bf16.mxu0 0
  %1018 = vmatpush2.bf16.msra.mxu0 0
  %1019 = vmatprep.subr.bf16.mxu0 0
  %1020 = vmatpush2.bf16.msra.mxu0 0
  %1021 = vmatprep.subr.bf16.mxu0 0
  %1022 = vmatpush2.bf16.msra.mxu0 0
  %1023 = vmatprep.subr.bf16.mxu0 0
  %1024 = vmatpush2.bf16.msra.mxu0 0
  %1025 = vmatprep.subr.bf16.mxu0 0
  %1026 = vmatpush2.bf16.msra.mxu0 0
  %1027 = vmatprep.subr.bf16.mxu0 0
  %1028 = vmatpush2.bf16.msra.mxu0 0
  %1029 = vmatprep.subr.bf16.mxu0 0
  %1030 = vmatpush2.bf16.msra.mxu0 0
  %1031 = vmatprep.mubr.bf16.mxu0 0
  %1032 = vmatmul.mubr.bf16.gmra.mxu0 %v991
  %v1033 = vpop.f32.mrf.mxu0
  %v1034 = vadd.f32 0.0, %v1033
  %v1035 = vpop.f32.mrf.mxu0
  %v1036 = vadd.f32 0.0, %v1035
  %v1037 = vpop.f32.mrf.mxu0
  %v1038 = vpop.f32.mrf.mxu0
  %1039 = vdwg.mxu0
  %1040 = vmatprep.subr.bf16.mxu0 %v631
  %1041 = vmatpush1.bf16.msra.mxu0 %v630
  %1042 = vmatprep.subr.bf16.mxu0 %v627
  %1043 = vmatpush1.bf16.msra.mxu0 %v626
  %1044 = vmatprep.subr.bf16.mxu0 %v623
  %1045 = vmatpush1.bf16.msra.mxu0 %v622
  %1046 = vmatprep.subr.bf16.mxu0 %v619
  %1047 = vmatpush1.bf16.msra.mxu0 %v618
  %1048 = vmatprep.subr.bf16.mxu0 %v615
  %1049 = vmatpush1.bf16.msra.mxu0 %v614
  %1050 = vmatprep.subr.bf16.mxu0 %v611
  %1051 = vmatpush1.bf16.msra.mxu0 %v610
  %1052 = vmatprep.subr.bf16.mxu0 %v607
  %1053 = vmatpush1.bf16.msra.mxu0 %v606
  %1054 = vmatprep.subr.bf16.mxu0 %v603
  %1055 = vmatpush1.bf16.msra.mxu0 %v602
  %1056 = vmatprep.subr.bf16.mxu0 0
  %1057 = vmatpush2.bf16.msra.mxu0 0
  %1058 = vmatprep.subr.bf16.mxu0 0
  %1059 = vmatpush2.bf16.msra.mxu0 0
  %1060 = vmatprep.subr.bf16.mxu0 0
  %1061 = vmatpush2.bf16.msra.mxu0 0
  %1062 = vmatprep.subr.bf16.mxu0 0
  %1063 = vmatpush2.bf16.msra.mxu0 0
  %1064 = vmatprep.subr.bf16.mxu0 0
  %1065 = vmatpush2.bf16.msra.mxu0 0
  %1066 = vmatprep.subr.bf16.mxu0 0
  %1067 = vmatpush2.bf16.msra.mxu0 0
  %1068 = vmatprep.subr.bf16.mxu0 0
  %1069 = vmatpush2.bf16.msra.mxu0 0
  %1070 = vmatprep.subr.bf16.mxu0 0
  %1071 = vmatpush2.bf16.msra.mxu0 0
  %1072 = vmatprep.mubr.bf16.mxu0 0
  %1073 = vmatmul.mubr.bf16.gmra.mxu0 %v991
  %v1074 = vpop.f32.mrf.mxu0
  %v1075 = vadd.f32 0.0, %v1074
  %v1076 = vpop.f32.mrf.mxu0
  %v1077 = vadd.f32 0.0, %v1076
  %v1078 = vpop.f32.mrf.mxu0
  %v1079 = vpop.f32.mrf.mxu0
  %1080 = vdwg.mxu0
  %v1081 = vadd.f32 %v995, %v1034
  %v1082 = vadd.f32 %v996, %v1036
  %v1083 = vadd.f32 %v997, %v1075
  %v1084 = vadd.f32 %v998, %v1077
  %v1085 = vmul.f32 %v1081, 0.5
  %v1086 = vtanh.pop %v1085
  %v1087 = vmul.f32 %v1086, 0.5
  %v1088 = vadd.f32 %v1087, 0.5
  %v1089 = vmul.f32 %v1082, 0.5
  %v1090 = vtanh.pop %v1089
  %v1091 = vmul.f32 %v1090, 0.5
  %v1092 = vadd.f32 %v1091, 0.5
  %v1093 = vtanh.pop %v1083
  %v1094 = vmul.f32 %v1084, 0.5
  %v1095 = vtanh.pop %v1094
  %v1096 = vmul.f32 %v1095, 0.5
  %v1097 = vadd.f32 %v1096, 0.5
  %v1098 = vmul.f32 %v1092, %v988
  %v1099 = vmul.f32 %v1088, %v1093
  %v1100 = vadd.f32 %v1098, %v1099
  %v1101 = vtanh.pop %v1100
  %v1102 = vmul.f32 %v1097, %v1101
  %v1103 = vpack.c.bf16 %v1102, %v1102
  %s1104 = scalar_lea.vmem [#allocation5], 12
  %1105 = vst [vmem:[%s1104] sm:$0xf] %v1103
  %s1106 = scalar_lea.vmem [#allocation4], 128
  %v1107 = vld [vmem:[%s1106] sm:$0xff]
  %v1108 = vld [vmem:[%s1106 + $0x8] sm:$0xff]
  %v1109 = vld [vmem:[%s1106 + $0x10] sm:$0xff]
  %v1110 = vld [vmem:[%s1106 + $0x18] sm:$0xff]
  %1111 = vmatprep.subr.bf16.mxu0 %v629
  %1112 = vmatpush1.bf16.msra.mxu0 %v628
  %1113 = vmatprep.subr.bf16.mxu0 %v625
  %1114 = vmatpush1.bf16.msra.mxu0 %v624
  %1115 = vmatprep.subr.bf16.mxu0 %v621
  %1116 = vmatpush1.bf16.msra.mxu0 %v620
  %1117 = vmatprep.subr.bf16.mxu0 %v617
  %1118 = vmatpush1.bf16.msra.mxu0 %v616
  %1119 = vmatprep.subr.bf16.mxu0 %v613
  %1120 = vmatpush1.bf16.msra.mxu0 %v612
  %1121 = vmatprep.subr.bf16.mxu0 %v609
  %1122 = vmatpush1.bf16.msra.mxu0 %v608
  %1123 = vmatprep.subr.bf16.mxu0 %v605
  %1124 = vmatpush1.bf16.msra.mxu0 %v604
  %1125 = vmatprep.subr.bf16.mxu0 %v601
  %1126 = vmatpush1.bf16.msra.mxu0 %v600
  %1127 = vmatprep.subr.bf16.mxu0 0
  %1128 = vmatpush2.bf16.msra.mxu0 0
  %1129 = vmatprep.subr.bf16.mxu0 0
  %1130 = vmatpush2.bf16.msra.mxu0 0
  %1131 = vmatprep.subr.bf16.mxu0 0
  %1132 = vmatpush2.bf16.msra.mxu0 0
  %1133 = vmatprep.subr.bf16.mxu0 0
  %1134 = vmatpush2.bf16.msra.mxu0 0
  %1135 = vmatprep.subr.bf16.mxu0 0
  %1136 = vmatpush2.bf16.msra.mxu0 0
  %1137 = vmatprep.subr.bf16.mxu0 0
  %1138 = vmatpush2.bf16.msra.mxu0 0
  %1139 = vmatprep.subr.bf16.mxu0 0
  %1140 = vmatpush2.bf16.msra.mxu0 0
  %1141 = vmatprep.subr.bf16.mxu0 0
  %1142 = vmatpush2.bf16.msra.mxu0 0
  %1143 = vmatprep.mubr.bf16.mxu0 0
  %1144 = vmatmul.mubr.bf16.gmra.mxu0 %v1103
  %v1145 = vpop.f32.mrf.mxu0
  %v1146 = vadd.f32 0.0, %v1145
  %v1147 = vpop.f32.mrf.mxu0
  %v1148 = vadd.f32 0.0, %v1147
  %v1149 = vpop.f32.mrf.mxu0
  %v1150 = vpop.f32.mrf.mxu0
  %1151 = vdwg.mxu0
  %1152 = vmatprep.subr.bf16.mxu0 %v631
  %1153 = vmatpush1.bf16.msra.mxu0 %v630
  %1154 = vmatprep.subr.bf16.mxu0 %v627
  %1155 = vmatpush1.bf16.msra.mxu0 %v626
  %1156 = vmatprep.subr.bf16.mxu0 %v623
  %1157 = vmatpush1.bf16.msra.mxu0 %v622
  %1158 = vmatprep.subr.bf16.mxu0 %v619
  %1159 = vmatpush1.bf16.msra.mxu0 %v618
  %1160 = vmatprep.subr.bf16.mxu0 %v615
  %1161 = vmatpush1.bf16.msra.mxu0 %v614
  %1162 = vmatprep.subr.bf16.mxu0 %v611
  %1163 = vmatpush1.bf16.msra.mxu0 %v610
  %1164 = vmatprep.subr.bf16.mxu0 %v607
  %1165 = vmatpush1.bf16.msra.mxu0 %v606
  %1166 = vmatprep.subr.bf16.mxu0 %v603
  %1167 = vmatpush1.bf16.msra.mxu0 %v602
  %1168 = vmatprep.subr.bf16.mxu0 0
  %1169 = vmatpush2.bf16.msra.mxu0 0
  %1170 = vmatprep.subr.bf16.mxu0 0
  %1171 = vmatpush2.bf16.msra.mxu0 0
  %1172 = vmatprep.subr.bf16.mxu0 0
  %1173 = vmatpush2.bf16.msra.mxu0 0
  %1174 = vmatprep.subr.bf16.mxu0 0
  %1175 = vmatpush2.bf16.msra.mxu0 0
  %1176 = vmatprep.subr.bf16.mxu0 0
  %1177 = vmatpush2.bf16.msra.mxu0 0
  %1178 = vmatprep.subr.bf16.mxu0 0
  %1179 = vmatpush2.bf16.msra.mxu0 0
  %1180 = vmatprep.subr.bf16.mxu0 0
  %1181 = vmatpush2.bf16.msra.mxu0 0
  %1182 = vmatprep.subr.bf16.mxu0 0
  %1183 = vmatpush2.bf16.msra.mxu0 0
  %1184 = vmatprep.mubr.bf16.mxu0 0
  %1185 = vmatmul.mubr.bf16.gmra.mxu0 %v1103
  %v1186 = vpop.f32.mrf.mxu0
  %v1187 = vadd.f32 0.0, %v1186
  %v1188 = vpop.f32.mrf.mxu0
  %v1189 = vadd.f32 0.0, %v1188
  %v1190 = vpop.f32.mrf.mxu0
  %v1191 = vpop.f32.mrf.mxu0
  %1192 = vdwg.mxu0
  %v1193 = vadd.f32 %v1107, %v1146
  %v1194 = vadd.f32 %v1108, %v1148
  %v1195 = vadd.f32 %v1109, %v1187
  %v1196 = vadd.f32 %v1110, %v1189
  %v1197 = vmul.f32 %v1193, 0.5
  %v1198 = vtanh.pop %v1197
  %v1199 = vmul.f32 %v1198, 0.5
  %v1200 = vadd.f32 %v1199, 0.5
  %v1201 = vmul.f32 %v1194, 0.5
  %v1202 = vtanh.pop %v1201
  %v1203 = vmul.f32 %v1202, 0.5
  %v1204 = vadd.f32 %v1203, 0.5
  %v1205 = vtanh.pop %v1195
  %v1206 = vmul.f32 %v1196, 0.5
  %v1207 = vtanh.pop %v1206
  %v1208 = vmul.f32 %v1207, 0.5
  %v1209 = vadd.f32 %v1208, 0.5
  %v1210 = vmul.f32 %v1204, %v1100
  %v1211 = vmul.f32 %v1200, %v1205
  %v1212 = vadd.f32 %v1210, %v1211
  %v1213 = vtanh.pop %v1212
  %v1214 = vmul.f32 %v1209, %v1213
  %v1215 = vpack.c.bf16 %v1214, %v1214
  %s1216 = scalar_lea.vmem [#allocation5], 16
  %1217 = vst [vmem:[%s1216] sm:$0xf] %v1215
  %s1218 = scalar_lea.vmem [#allocation4], 160
  %v1219 = vld [vmem:[%s1218] sm:$0xff]
  %v1220 = vld [vmem:[%s1218 + $0x8] sm:$0xff]
  %v1221 = vld [vmem:[%s1218 + $0x10] sm:$0xff]
  %v1222 = vld [vmem:[%s1218 + $0x18] sm:$0xff]
  %1223 = vmatprep.subr.bf16.mxu0 %v629
  %1224 = vmatpush1.bf16.msra.mxu0 %v628
  %1225 = vmatprep.subr.bf16.mxu0 %v625
  %1226 = vmatpush1.bf16.msra.mxu0 %v624
  %1227 = vmatprep.subr.bf16.mxu0 %v621
  %1228 = vmatpush1.bf16.msra.mxu0 %v620
  %1229 = vmatprep.subr.bf16.mxu0 %v617
  %1230 = vmatpush1.bf16.msra.mxu0 %v616
  %1231 = vmatprep.subr.bf16.mxu0 %v613
  %1232 = vmatpush1.bf16.msra.mxu0 %v612
  %1233 = vmatprep.subr.bf16.mxu0 %v609
  %1234 = vmatpush1.bf16.msra.mxu0 %v608
  %1235 = vmatprep.subr.bf16.mxu0 %v605
  %1236 = vmatpush1.bf16.msra.mxu0 %v604
  %1237 = vmatprep.subr.bf16.mxu0 %v601
  %1238 = vmatpush1.bf16.msra.mxu0 %v600
  %1239 = vmatprep.subr.bf16.mxu0 0
  %1240 = vmatpush2.bf16.msra.mxu0 0
  %1241 = vmatprep.subr.bf16.mxu0 0
  %1242 = vmatpush2.bf16.msra.mxu0 0
  %1243 = vmatprep.subr.bf16.mxu0 0
  %1244 = vmatpush2.bf16.msra.mxu0 0
  %1245 = vmatprep.subr.bf16.mxu0 0
  %1246 = vmatpush2.bf16.msra.mxu0 0
  %1247 = vmatprep.subr.bf16.mxu0 0
  %1248 = vmatpush2.bf16.msra.mxu0 0
  %1249 = vmatprep.subr.bf16.mxu0 0
  %1250 = vmatpush2.bf16.msra.mxu0 0
  %1251 = vmatprep.subr.bf16.mxu0 0
  %1252 = vmatpush2.bf16.msra.mxu0 0
  %1253 = vmatprep.subr.bf16.mxu0 0
  %1254 = vmatpush2.bf16.msra.mxu0 0
  %1255 = vmatprep.mubr.bf16.mxu0 0
  %1256 = vmatmul.mubr.bf16.gmra.mxu0 %v1215
  %v1257 = vpop.f32.mrf.mxu0
  %v1258 = vadd.f32 0.0, %v1257
  %v1259 = vpop.f32.mrf.mxu0
  %v1260 = vadd.f32 0.0, %v1259
  %v1261 = vpop.f32.mrf.mxu0
  %v1262 = vpop.f32.mrf.mxu0
  %1263 = vdwg.mxu0
  %1264 = vmatprep.subr.bf16.mxu0 %v631
  %1265 = vmatpush1.bf16.msra.mxu0 %v630
  %1266 = vmatprep.subr.bf16.mxu0 %v627
  %1267 = vmatpush1.bf16.msra.mxu0 %v626
  %1268 = vmatprep.subr.bf16.mxu0 %v623
  %1269 = vmatpush1.bf16.msra.mxu0 %v622
  %1270 = vmatprep.subr.bf16.mxu0 %v619
  %1271 = vmatpush1.bf16.msra.mxu0 %v618
  %1272 = vmatprep.subr.bf16.mxu0 %v615
  %1273 = vmatpush1.bf16.msra.mxu0 %v614
  %1274 = vmatprep.subr.bf16.mxu0 %v611
  %1275 = vmatpush1.bf16.msra.mxu0 %v610
  %1276 = vmatprep.subr.bf16.mxu0 %v607
  %1277 = vmatpush1.bf16.msra.mxu0 %v606
  %1278 = vmatprep.subr.bf16.mxu0 %v603
  %1279 = vmatpush1.bf16.msra.mxu0 %v602
  %1280 = vmatprep.subr.bf16.mxu0 0
  %1281 = vmatpush2.bf16.msra.mxu0 0
  %1282 = vmatprep.subr.bf16.mxu0 0
  %1283 = vmatpush2.bf16.msra.mxu0 0
  %1284 = vmatprep.subr.bf16.mxu0 0
  %1285 = vmatpush2.bf16.msra.mxu0 0
  %1286 = vmatprep.subr.bf16.mxu0 0
  %1287 = vmatpush2.bf16.msra.mxu0 0
  %1288 = vmatprep.subr.bf16.mxu0 0
  %1289 = vmatpush2.bf16.msra.mxu0 0
  %1290 = vmatprep.subr.bf16.mxu0 0
  %1291 = vmatpush2.bf16.msra.mxu0 0
  %1292 = vmatprep.subr.bf16.mxu0 0
  %1293 = vmatpush2.bf16.msra.mxu0 0
  %1294 = vmatprep.subr.bf16.mxu0 0
  %1295 = vmatpush2.bf16.msra.mxu0 0
  %1296 = vmatprep.mubr.bf16.mxu0 0
  %1297 = vmatmul.mubr.bf16.gmra.mxu0 %v1215
  %v1298 = vpop.f32.mrf.mxu0
  %v1299 = vadd.f32 0.0, %v1298
  %v1300 = vpop.f32.mrf.mxu0
  %v1301 = vadd.f32 0.0, %v1300
  %v1302 = vpop.f32.mrf.mxu0
  %v1303 = vpop.f32.mrf.mxu0
  %1304 = vdwg.mxu0
  %v1305 = vadd.f32 %v1219, %v1258
  %v1306 = vadd.f32 %v1220, %v1260
  %v1307 = vadd.f32 %v1221, %v1299
  %v1308 = vadd.f32 %v1222, %v1301
  %v1309 = vmul.f32 %v1305, 0.5
  %v1310 = vtanh.pop %v1309
  %v1311 = vmul.f32 %v1310, 0.5
  %v1312 = vadd.f32 %v1311, 0.5
  %v1313 = vmul.f32 %v1306, 0.5
  %v1314 = vtanh.pop %v1313
  %v1315 = vmul.f32 %v1314, 0.5
  %v1316 = vadd.f32 %v1315, 0.5
  %v1317 = vtanh.pop %v1307
  %v1318 = vmul.f32 %v1308, 0.5
  %v1319 = vtanh.pop %v1318
  %v1320 = vmul.f32 %v1319, 0.5
  %v1321 = vadd.f32 %v1320, 0.5
  %v1322 = vmul.f32 %v1316, %v1212
  %v1323 = vmul.f32 %v1312, %v1317
  %v1324 = vadd.f32 %v1322, %v1323
  %v1325 = vtanh.pop %v1324
  %v1326 = vmul.f32 %v1321, %v1325
  %v1327 = vpack.c.bf16 %v1326, %v1326
  %s1328 = scalar_lea.vmem [#allocation5], 20
  %1329 = vst [vmem:[%s1328] sm:$0xf] %v1327
  %s1330 = scalar_lea.vmem [#allocation4], 192
  %v1331 = vld [vmem:[%s1330] sm:$0xff]
  %v1332 = vld [vmem:[%s1330 + $0x8] sm:$0xff]
  %v1333 = vld [vmem:[%s1330 + $0x10] sm:$0xff]
  %v1334 = vld [vmem:[%s1330 + $0x18] sm:$0xff]
  %1335 = vmatprep.subr.bf16.mxu0 %v629
  %1336 = vmatpush1.bf16.msra.mxu0 %v628
  %1337 = vmatprep.subr.bf16.mxu0 %v625
  %1338 = vmatpush1.bf16.msra.mxu0 %v624
  %1339 = vmatprep.subr.bf16.mxu0 %v621
  %1340 = vmatpush1.bf16.msra.mxu0 %v620
  %1341 = vmatprep.subr.bf16.mxu0 %v617
  %1342 = vmatpush1.bf16.msra.mxu0 %v616
  %1343 = vmatprep.subr.bf16.mxu0 %v613
  %1344 = vmatpush1.bf16.msra.mxu0 %v612
  %1345 = vmatprep.subr.bf16.mxu0 %v609
  %1346 = vmatpush1.bf16.msra.mxu0 %v608
  %1347 = vmatprep.subr.bf16.mxu0 %v605
  %1348 = vmatpush1.bf16.msra.mxu0 %v604
  %1349 = vmatprep.subr.bf16.mxu0 %v601
  %1350 = vmatpush1.bf16.msra.mxu0 %v600
  %1351 = vmatprep.subr.bf16.mxu0 0
  %1352 = vmatpush2.bf16.msra.mxu0 0
  %1353 = vmatprep.subr.bf16.mxu0 0
  %1354 = vmatpush2.bf16.msra.mxu0 0
  %1355 = vmatprep.subr.bf16.mxu0 0
  %1356 = vmatpush2.bf16.msra.mxu0 0
  %1357 = vmatprep.subr.bf16.mxu0 0
  %1358 = vmatpush2.bf16.msra.mxu0 0
  %1359 = vmatprep.subr.bf16.mxu0 0
  %1360 = vmatpush2.bf16.msra.mxu0 0
  %1361 = vmatprep.subr.bf16.mxu0 0
  %1362 = vmatpush2.bf16.msra.mxu0 0
  %1363 = vmatprep.subr.bf16.mxu0 0
  %1364 = vmatpush2.bf16.msra.mxu0 0
  %1365 = vmatprep.subr.bf16.mxu0 0
  %1366 = vmatpush2.bf16.msra.mxu0 0
  %1367 = vmatprep.mubr.bf16.mxu0 0
  %1368 = vmatmul.mubr.bf16.gmra.mxu0 %v1327
  %v1369 = vpop.f32.mrf.mxu0
  %v1370 = vadd.f32 0.0, %v1369
  %v1371 = vpop.f32.mrf.mxu0
  %v1372 = vadd.f32 0.0, %v1371
  %v1373 = vpop.f32.mrf.mxu0
  %v1374 = vpop.f32.mrf.mxu0
  %1375 = vdwg.mxu0
  %1376 = vmatprep.subr.bf16.mxu0 %v631
  %1377 = vmatpush1.bf16.msra.mxu0 %v630
  %1378 = vmatprep.subr.bf16.mxu0 %v627
  %1379 = vmatpush1.bf16.msra.mxu0 %v626
  %1380 = vmatprep.subr.bf16.mxu0 %v623
  %1381 = vmatpush1.bf16.msra.mxu0 %v622
  %1382 = vmatprep.subr.bf16.mxu0 %v619
  %1383 = vmatpush1.bf16.msra.mxu0 %v618
  %1384 = vmatprep.subr.bf16.mxu0 %v615
  %1385 = vmatpush1.bf16.msra.mxu0 %v614
  %1386 = vmatprep.subr.bf16.mxu0 %v611
  %1387 = vmatpush1.bf16.msra.mxu0 %v610
  %1388 = vmatprep.subr.bf16.mxu0 %v607
  %1389 = vmatpush1.bf16.msra.mxu0 %v606
  %1390 = vmatprep.subr.bf16.mxu0 %v603
  %1391 = vmatpush1.bf16.msra.mxu0 %v602
  %1392 = vmatprep.subr.bf16.mxu0 0
  %1393 = vmatpush2.bf16.msra.mxu0 0
  %1394 = vmatprep.subr.bf16.mxu0 0
  %1395 = vmatpush2.bf16.msra.mxu0 0
  %1396 = vmatprep.subr.bf16.mxu0 0
  %1397 = vmatpush2.bf16.msra.mxu0 0
  %1398 = vmatprep.subr.bf16.mxu0 0
  %1399 = vmatpush2.bf16.msra.mxu0 0
  %1400 = vmatprep.subr.bf16.mxu0 0
  %1401 = vmatpush2.bf16.msra.mxu0 0
  %1402 = vmatprep.subr.bf16.mxu0 0
  %1403 = vmatpush2.bf16.msra.mxu0 0
  %1404 = vmatprep.subr.bf16.mxu0 0
  %1405 = vmatpush2.bf16.msra.mxu0 0
  %1406 = vmatprep.subr.bf16.mxu0 0
  %1407 = vmatpush2.bf16.msra.mxu0 0
  %1408 = vmatprep.mubr.bf16.mxu0 0
  %1409 = vmatmul.mubr.bf16.gmra.mxu0 %v1327
  %v1410 = vpop.f32.mrf.mxu0
  %v1411 = vadd.f32 0.0, %v1410
  %v1412 = vpop.f32.mrf.mxu0
  %v1413 = vadd.f32 0.0, %v1412
  %v1414 = vpop.f32.mrf.mxu0
  %v1415 = vpop.f32.mrf.mxu0
  %1416 = vdwg.mxu0
  %v1417 = vadd.f32 %v1331, %v1370
  %v1418 = vadd.f32 %v1332, %v1372
  %v1419 = vadd.f32 %v1333, %v1411
  %v1420 = vadd.f32 %v1334, %v1413
  %v1421 = vmul.f32 %v1417, 0.5
  %v1422 = vtanh.pop %v1421
  %v1423 = vmul.f32 %v1422, 0.5
  %v1424 = vadd.f32 %v1423, 0.5
  %v1425 = vmul.f32 %v1418, 0.5
  %v1426 = vtanh.pop %v1425
  %v1427 = vmul.f32 %v1426, 0.5
  %v1428 = vadd.f32 %v1427, 0.5
  %v1429 = vtanh.pop %v1419
  %v1430 = vmul.f32 %v1420, 0.5
  %v1431 = vtanh.pop %v1430
  %v1432 = vmul.f32 %v1431, 0.5
  %v1433 = vadd.f32 %v1432, 0.5
  %v1434 = vmul.f32 %v1428, %v1324
  %v1435 = vmul.f32 %v1424, %v1429
  %v1436 = vadd.f32 %v1434, %v1435
  %v1437 = vtanh.pop %v1436
  %v1438 = vmul.f32 %v1433, %v1437
  %v1439 = vpack.c.bf16 %v1438, %v1438
  %s1440 = scalar_lea.vmem [#allocation5], 24
  %1441 = vst [vmem:[%s1440] sm:$0xf] %v1439
  %s1442 = scalar_lea.vmem [#allocation4], 224
  %v1443 = vld [vmem:[%s1442] sm:$0xff]
  %v1444 = vld [vmem:[%s1442 + $0x8] sm:$0xff]
  %v1445 = vld [vmem:[%s1442 + $0x10] sm:$0xff]
  %v1446 = vld [vmem:[%s1442 + $0x18] sm:$0xff]
  %1447 = vmatprep.subr.bf16.mxu0 %v629
  %1448 = vmatpush1.bf16.msra.mxu0 %v628
  %1449 = vmatprep.subr.bf16.mxu0 %v625
  %1450 = vmatpush1.bf16.msra.mxu0 %v624
  %1451 = vmatprep.subr.bf16.mxu0 %v621
  %1452 = vmatpush1.bf16.msra.mxu0 %v620
  %1453 = vmatprep.subr.bf16.mxu0 %v617
  %1454 = vmatpush1.bf16.msra.mxu0 %v616
  %1455 = vmatprep.subr.bf16.mxu0 %v613
  %1456 = vmatpush1.bf16.msra.mxu0 %v612
  %1457 = vmatprep.subr.bf16.mxu0 %v609
  %1458 = vmatpush1.bf16.msra.mxu0 %v608
  %1459 = vmatprep.subr.bf16.mxu0 %v605
  %1460 = vmatpush1.bf16.msra.mxu0 %v604
  %1461 = vmatprep.subr.bf16.mxu0 %v601
  %1462 = vmatpush1.bf16.msra.mxu0 %v600
  %1463 = vmatprep.subr.bf16.mxu0 0
  %1464 = vmatpush2.bf16.msra.mxu0 0
  %1465 = vmatprep.subr.bf16.mxu0 0
  %1466 = vmatpush2.bf16.msra.mxu0 0
  %1467 = vmatprep.subr.bf16.mxu0 0
  %1468 = vmatpush2.bf16.msra.mxu0 0
  %1469 = vmatprep.subr.bf16.mxu0 0
  %1470 = vmatpush2.bf16.msra.mxu0 0
  %1471 = vmatprep.subr.bf16.mxu0 0
  %1472 = vmatpush2.bf16.msra.mxu0 0
  %1473 = vmatprep.subr.bf16.mxu0 0
  %1474 = vmatpush2.bf16.msra.mxu0 0
  %1475 = vmatprep.subr.bf16.mxu0 0
  %1476 = vmatpush2.bf16.msra.mxu0 0
  %1477 = vmatprep.subr.bf16.mxu0 0
  %1478 = vmatpush2.bf16.msra.mxu0 0
  %1479 = vmatprep.mubr.bf16.mxu0 0
  %1480 = vmatmul.mubr.bf16.gmra.mxu0 %v1439
  %v1481 = vpop.f32.mrf.mxu0
  %v1482 = vadd.f32 0.0, %v1481
  %v1483 = vpop.f32.mrf.mxu0
  %v1484 = vadd.f32 0.0, %v1483
  %v1485 = vpop.f32.mrf.mxu0
  %v1486 = vpop.f32.mrf.mxu0
  %1487 = vdwg.mxu0
  %1488 = vmatprep.subr.bf16.mxu0 %v631
  %1489 = vmatpush1.bf16.msra.mxu0 %v630
  %1490 = vmatprep.subr.bf16.mxu0 %v627
  %1491 = vmatpush1.bf16.msra.mxu0 %v626
  %1492 = vmatprep.subr.bf16.mxu0 %v623
  %1493 = vmatpush1.bf16.msra.mxu0 %v622
  %1494 = vmatprep.subr.bf16.mxu0 %v619
  %1495 = vmatpush1.bf16.msra.mxu0 %v618
  %1496 = vmatprep.subr.bf16.mxu0 %v615
  %1497 = vmatpush1.bf16.msra.mxu0 %v614
  %1498 = vmatprep.subr.bf16.mxu0 %v611
  %1499 = vmatpush1.bf16.msra.mxu0 %v610
  %1500 = vmatprep.subr.bf16.mxu0 %v607
  %1501 = vmatpush1.bf16.msra.mxu0 %v606
  %1502 = vmatprep.subr.bf16.mxu0 %v603
  %1503 = vmatpush1.bf16.msra.mxu0 %v602
  %1504 = vmatprep.subr.bf16.mxu0 0
  %1505 = vmatpush2.bf16.msra.mxu0 0
  %1506 = vmatprep.subr.bf16.mxu0 0
  %1507 = vmatpush2.bf16.msra.mxu0 0
  %1508 = vmatprep.subr.bf16.mxu0 0
  %1509 = vmatpush2.bf16.msra.mxu0 0
  %1510 = vmatprep.subr.bf16.mxu0 0
  %1511 = vmatpush2.bf16.msra.mxu0 0
  %1512 = vmatprep.subr.bf16.mxu0 0
  %1513 = vmatpush2.bf16.msra.mxu0 0
  %1514 = vmatprep.subr.bf16.mxu0 0
  %1515 = vmatpush2.bf16.msra.mxu0 0
  %1516 = vmatprep.subr.bf16.mxu0 0
  %1517 = vmatpush2.bf16.msra.mxu0 0
  %1518 = vmatprep.subr.bf16.mxu0 0
  %1519 = vmatpush2.bf16.msra.mxu0 0
  %1520 = vmatprep.mubr.bf16.mxu0 0
  %1521 = vmatmul.mubr.bf16.gmra.mxu0 %v1439
  %v1522 = vpop.f32.mrf.mxu0
  %v1523 = vadd.f32 0.0, %v1522
  %v1524 = vpop.f32.mrf.mxu0
  %v1525 = vadd.f32 0.0, %v1524
  %v1526 = vpop.f32.mrf.mxu0
  %v1527 = vpop.f32.mrf.mxu0
  %1528 = vdwg.mxu0
  %v1529 = vadd.f32 %v1443, %v1482
  %v1530 = vadd.f32 %v1444, %v1484
  %v1531 = vadd.f32 %v1445, %v1523
  %v1532 = vadd.f32 %v1446, %v1525
  %v1533 = vmul.f32 %v1529, 0.5
  %v1534 = vtanh.pop %v1533
  %v1535 = vmul.f32 %v1534, 0.5
  %v1536 = vadd.f32 %v1535, 0.5
  %v1537 = vmul.f32 %v1530, 0.5
  %v1538 = vtanh.pop %v1537
  %v1539 = vmul.f32 %v1538, 0.5
  %v1540 = vadd.f32 %v1539, 0.5
  %v1541 = vtanh.pop %v1531
  %v1542 = vmul.f32 %v1532, 0.5
  %v1543 = vtanh.pop %v1542
  %v1544 = vmul.f32 %v1543, 0.5
  %v1545 = vadd.f32 %v1544, 0.5
  %v1546 = vmul.f32 %v1540, %v1436
  %v1547 = vmul.f32 %v1536, %v1541
  %v1548 = vadd.f32 %v1546, %v1547
  %v1549 = vtanh.pop %v1548
  %v1550 = vmul.f32 %v1545, %v1549
  %v1551 = vpack.c.bf16 %v1550, %v1550
  %s1552 = scalar_lea.vmem [#allocation5], 28
  %1553 = vst [vmem:[%s1552] sm:$0xf] %v1551
  %p1554 = scmp.ne.s32.totalorder 0, 0
  // Predicated region
  $region38: #{sequence_net_forward.1} parent=0 // pred_check
    %p1555 = pneg %p1554
  $region39: #{sequence_net_forward.1} parent=0 // pred_check_branch
    %1557 = sbr.rel (%p1555) target = $region41
  $region40: #{sequence_net_forward.1} parent=0 // pred_region
    %1558 = vst [vmem:[#allocation2] sm:$0xff] %v1550
    %1559 = vst [vmem:[#allocation3] sm:$0xff] %v1548
  $region41: #{sequence_net_forward.1} parent=0 // pred_fallthru
    _
  %v1560 = vld [vmem:[#allocation5] sm:$0xf]
  %v1561 = vld [vmem:[#allocation5 + $0x4] sm:$0xf]
  %v1562 = vld [vmem:[#allocation5 + $0x8] sm:$0xf]
  %v1563 = vld [vmem:[#allocation5 + $0xc] sm:$0xf]
  %v1564 = vld [vmem:[#allocation5 + $0x10] sm:$0xf]
  %v1565 = vld [vmem:[#allocation5 + $0x14] sm:$0xf]
  %v1566 = vld [vmem:[#allocation5 + $0x18] sm:$0xf]
  %v1567 = vld [vmem:[#allocation5 + $0x1c] sm:$0xf]
  %v1568 = vld [vmem:[%s6] sm:$0xf]
  %v1569 = vld [vmem:[%s6 + $0x4] sm:$0xf]
  %v1570 = vld [vmem:[%s6 + $0x8] sm:$0xf]
  %v1571 = vld [vmem:[%s6 + $0xc] sm:$0xf]
  %v1572 = vld [vmem:[%s6 + $0x10] sm:$0xf]
  %v1573 = vld [vmem:[%s6 + $0x14] sm:$0xf]
  %v1574 = vld [vmem:[%s6 + $0x18] sm:$0xf]
  %v1575 = vld [vmem:[%s6 + $0x1c] sm:$0xf]
  %v1576 = vld [vmem:[%s6 + $0x20] sm:$0xf]
  %v1577 = vld [vmem:[%s6 + $0x24] sm:$0xf]
  %v1578 = vld [vmem:[%s6 + $0x28] sm:$0xf]
  %v1579 = vld [vmem:[%s6 + $0x2c] sm:$0xf]
  %v1580 = vld [vmem:[%s6 + $0x30] sm:$0xf]
  %v1581 = vld [vmem:[%s6 + $0x34] sm:$0xf]
  %v1582 = vld [vmem:[%s6 + $0x38] sm:$0xf]
  %v1583 = vld [vmem:[%s6 + $0x3c] sm:$0xf]
  %v1584 = vld [vmem:[%s7] sm:$0x1]
  %v1586 = vlaneseq
  %v1587 = vshrl.u32 %v1586, 7
  %v1588 = vsub.s32 0, %v1587
  %v1589 = vrot.slane %v1584, %v1588
  %v1599 = vunpack.c.l.b16 %v1560
  %v1600 = vunpack.c.l.b16 %v1561
  %v1601 = vunpack.c.l.b16 %v1562
  %v1602 = vunpack.c.l.b16 %v1563
  %v1603 = vunpack.c.l.b16 %v1564
  %v1604 = vunpack.c.l.b16 %v1565
  %v1605 = vunpack.c.l.b16 %v1566
  %v1606 = vunpack.c.l.b16 %v1567
  %v1607 = vpack.c.b16 %v1600, %v1599
  %v1608 = vpack.c.b16 %v1602, %v1601
  %v1609 = vpack.c.b16 %v1604, %v1603
  %v1610 = vpack.c.b16 %v1606, %v1605
  %v1631 = vunpack.c.l.b16 %v1568
  %v1632 = vunpack.c.l.b16 %v1569
  %v1633 = vunpack.c.l.b16 %v1570
  %v1634 = vunpack.c.l.b16 %v1571
  %v1635 = vunpack.c.l.b16 %v1572
  %v1636 = vunpack.c.l.b16 %v1573
  %v1637 = vunpack.c.l.b16 %v1574
  %v1638 = vunpack.c.l.b16 %v1575
  %v1639 = vunpack.c.l.b16 %v1576
  %v1640 = vunpack.c.l.b16 %v1577
  %v1641 = vunpack.c.l.b16 %v1578
  %v1642 = vunpack.c.l.b16 %v1579
  %v1643 = vunpack.c.l.b16 %v1580
  %v1644 = vunpack.c.l.b16 %v1581
  %v1645 = vunpack.c.l.b16 %v1582
  %v1646 = vunpack.c.l.b16 %v1583
  %v1647 = vpack.c.b16 %v1632, %v1631
  %v1648 = vpack.c.b16 %v1634, %v1633
  %v1649 = vpack.c.b16 %v1636, %v1635
  %v1650 = vpack.c.b16 %v1638, %v1637
  %v1651 = vpack.c.b16 %v1640, %v1639
  %v1652 = vpack.c.b16 %v1642, %v1641
  %v1653 = vpack.c.b16 %v1644, %v1643
  %v1654 = vpack.c.b16 %v1646, %v1645
  %1663 = vmatprep.subr.bf16.mxu0 0
  %1664 = vmatpush1.bf16.msra.mxu0 %v1654
  %1665 = vmatprep.subr.bf16.mxu0 0
  %1666 = vmatpush1.bf16.msra.mxu0 %v1653
  %1667 = vmatprep.subr.bf16.mxu0 0
  %1668 = vmatpush1.bf16.msra.mxu0 %v1652
  %1669 = vmatprep.subr.bf16.mxu0 0
  %1670 = vmatpush1.bf16.msra.mxu0 %v1651
  %1671 = vmatprep.subr.bf16.mxu0 0
  %1672 = vmatpush1.bf16.msra.mxu0 %v1650
  %1673 = vmatprep.subr.bf16.mxu0 0
  %1674 = vmatpush1.bf16.msra.mxu0 %v1649
  %1675 = vmatprep.subr.bf16.mxu0 0
  %1676 = vmatpush1.bf16.msra.mxu0 %v1648
  %1677 = vmatprep.subr.bf16.mxu0 0
  %1678 = vmatpush1.bf16.msra.mxu0 %v1647
  %1679 = vmatprep.subr.bf16.mxu0 0
  %1680 = vmatpush2.bf16.msra.mxu0 0
  %1681 = vmatprep.subr.bf16.mxu0 0
  %1682 = vmatpush2.bf16.msra.mxu0 0
  %1683 = vmatprep.subr.bf16.mxu0 0
  %1684 = vmatpush2.bf16.msra.mxu0 0
  %1685 = vmatprep.subr.bf16.mxu0 0
  %1686 = vmatpush2.bf16.msra.mxu0 0
  %1687 = vmatprep.subr.bf16.mxu0 0
  %1688 = vmatpush2.bf16.msra.mxu0 0
  %1689 = vmatprep.subr.bf16.mxu0 0
  %1690 = vmatpush2.bf16.msra.mxu0 0
  %1691 = vmatprep.subr.bf16.mxu0 0
  %1692 = vmatpush2.bf16.msra.mxu0 0
  %1693 = vmatprep.subr.bf16.mxu0 0
  %1694 = vmatpush2.bf16.msra.mxu0 0
  %1695 = vmatprep.mubr.bf16.mxu0 0
  %1696 = vmatmul.mubr.bf16.gmra.mxu0 %v1607
  %v1697 = vpop.f32.mrf.mxu0
  %v1698 = vadd.f32 %v1589, %v1697
  %v1699 = vpop.f32.mrf.mxu0
  %v1700 = vpop.f32.mrf.mxu0
  %v1701 = vadd.f32 %v1589, %v1700
  %v1702 = vpop.f32.mrf.mxu0
  %1703 = vmatprep.mubr.bf16.mxu0 0
  %1704 = vmatmul.mubr.bf16.gmra.mxu0 %v1608
  %v1705 = vpop.f32.mrf.mxu0
  %v1706 = vadd.f32 %v1589, %v1705
  %v1707 = vpop.f32.mrf.mxu0
  %v1708 = vpop.f32.mrf.mxu0
  %v1709 = vadd.f32 %v1589, %v1708
  %v1710 = vpop.f32.mrf.mxu0
  %1711 = vmatprep.mubr.bf16.mxu0 0
  %1712 = vmatmul.mubr.bf16.gmra.mxu0 %v1609
  %v1713 = vpop.f32.mrf.mxu0
  %v1714 = vadd.f32 %v1589, %v1713
  %v1715 = vpop.f32.mrf.mxu0
  %v1716 = vpop.f32.mrf.mxu0
  %v1717 = vadd.f32 %v1589, %v1716
  %v1718 = vpop.f32.mrf.mxu0
  %1719 = vmatprep.mubr.bf16.mxu0 0
  %1720 = vmatmul.mubr.bf16.gmra.mxu0 %v1610
  %v1721 = vpop.f32.mrf.mxu0
  %v1722 = vadd.f32 %v1589, %v1721
  %v1723 = vpop.f32.mrf.mxu0
  %v1724 = vpop.f32.mrf.mxu0
  %v1725 = vadd.f32 %v1589, %v1724
  %v1726 = vpop.f32.mrf.mxu0
  %1727 = vdwg.mxu0
  %1728 = vst [vmem:[%s8] sm:$0xff] %v1698
  %1729 = vst [vmem:[%s8 + $0x8] sm:$0xff] %v1701
  %1730 = vst [vmem:[%s8 + $0x10] sm:$0xff] %v1706
  %1731 = vst [vmem:[%s8 + $0x18] sm:$0xff] %v1709
  %1732 = vst [vmem:[%s8 + $0x20] sm:$0xff] %v1714
  %1733 = vst [vmem:[%s8 + $0x28] sm:$0xff] %v1717
  %1734 = vst [vmem:[%s8 + $0x30] sm:$0xff] %v1722
  %1735 = vst [vmem:[%s8 + $0x38] sm:$0xff] %v1725
  // Predicated region
  $region42: #{sequence_net_forward.1} parent=0 // pred_check
    %p1736 = pneg %p33
  $region43: #{sequence_net_forward.1} parent=0 // pred_check_branch
    %1738 = sbr.rel (%p1736) target = $region45
  $region44: #{sequence_net_forward.1} parent=0 // pred_region
    %1739 = vst [vmem:[%s9] sm:$0xff] %v1550
    %1740 = vst [vmem:[%s10] sm:$0xff] %v1548
  $region45: #{sequence_net_forward.1} parent=0 // pred_fallthru
    _
  // Predicated region
  $region46: #{sequence_net_forward.1} parent=0 // pred_check
    _
  $region47: #{sequence_net_forward.1} parent=0 // pred_check_branch
    %1742 = sbr.rel (0) target = $region49
  $region48: #{sequence_net_forward.1} parent=0 // pred_region
    _
  $region49: #{sequence_net_forward.1} parent=0 // pred_fallthru
    _
  // Predicated region
  $region50: #{sequence_net_forward.1} parent=0 // pred_check
    _
  $region51: #{sequence_net_forward.1} parent=0 // pred_check_branch
    %1744 = sbr.rel (0) target = $region53
  $region52: #{sequence_net_forward.1} parent=0 // pred_region
    _
  $region53: #{sequence_net_forward.1} parent=0 // pred_fallthru
    _
  // Predicated region
  $region54: #{sequence_net_forward.1} parent=0 // pred_check
    _
  $region55: #{sequence_net_forward.1} parent=0 // pred_check_branch
    %1746 = sbr.rel (0) target = $region57
  $region56: #{sequence_net_forward.1} parent=0 // pred_region
    _
  $region57: #{sequence_net_forward.1} parent=0 // pred_fallthru
    _
  // Predicated region
  $region58: #{sequence_net_forward.1} parent=0 // pred_check
    _
  $region59: #{sequence_net_forward.1} parent=0 // pred_check_branch
    %1748 = sbr.rel (0) target = $region61
  $region60: #{sequence_net_forward.1} parent=0 // pred_region
    _
  $region61: #{sequence_net_forward.1} parent=0 // pred_fallthru
    _
  // Predicated region
  $region62: #{sequence_net_forward.1} parent=0 // pred_check
    _
  $region63: #{sequence_net_forward.1} parent=0 // pred_check_branch
    %1750 = sbr.rel (0) target = $region65
  $region64: #{sequence_net_forward.1} parent=0 // pred_region
    _
  $region65: #{sequence_net_forward.1} parent=0 // pred_fallthru
    _
  // Predicated region
  $region66: #{sequence_net_forward.1} parent=0 // pred_check
    _
  $region67: #{sequence_net_forward.1} parent=0 // pred_check_branch
    %1752 = sbr.rel (0) target = $region69
  $region68: #{sequence_net_forward.1} parent=0 // pred_region
    _
  $region69: #{sequence_net_forward.1} parent=0 // pred_fallthru
    _

</llo_original>
